<compile_context>
chip_gen: v7x
topology: tpu7x:2x2x1
jax: 0.10.0
libtpu: 0.0.40
codegen_flags: <defaults>
</compile_context>

<pallas_src>
import functools

import jax
import jax.numpy as jnp
from jax.experimental import pallas as pl
from jax.experimental.pallas import tpu as pltpu

K = 7        # conv kernel size
PAD = 3      # padding on each side
LANES = 128  # TPU lane width
ALIGN = 16   # sublane alignment for the bf16 scratch (16 packed rows per vreg)


def _silu(x):
    return x * jax.nn.sigmoid(x)


def _round_up(x, m):
    return ((x + m - 1) // m) * m


def basic_block_kernel(x_ref, w1_ref, s1_ref, b1_ref, w2_ref, s2_ref, b2_ref,
                       out_ref, xpad_ref, hpad_ref, *, L, NB, Lw):
    """Fused BasicBlock7x7 for NB samples (stride=1, no downsample).

    x_ref   : (NB, L, Cp) f32   input, channels padded to Cp (multiple of 128)
    w1_ref  : (K, Cp, Cp) bf16  conv1 weight, tap-major (k, cin, cout)
    s1/b1   : (1, Cp)     f32   folded BN1 scale / bias
    w2_ref  : (K, Cp, Cp) bf16  conv2 weight, tap-major
    s2/b2   : (1, Cp)     f32   folded BN2 scale / bias
    out_ref : (NB, L, Cp) f32
    xpad_ref, hpad_ref : (NB*Lw + 2*ALIGN, Cp) bf16 flat halo scratches.

    Layout of the flat scratch: sample b's rows live at [b*Lw + ALIGN,
    b*Lw + ALIGN + L); the +-3 halo rows around each sample are zero.  With
    Lw a multiple of 16 every interior store is sublane-aligned, and one
    (NB*Lw, Cp) matmul per tap computes all samples at once (output row for
    (b, l) is b*Lw + l; the Lw - L "gap" rows are garbage and never read).
    """
    Cp = out_ref.shape[-1]
    M = NB * Lw
    gap = Lw - L                       # >= 2*PAD by construction
    off = ALIGN - PAD                  # tap-0 load offset

    zero_head = jnp.zeros((ALIGN, Cp), jnp.bfloat16)
    zero_gap = jnp.zeros((gap, Cp), jnp.bfloat16)

    # Zero only the halo / gap rows (cheap).  Done every grid step so it stays
    # correct when the parallel batch axis is sharded across TensorCores.
    xpad_ref[pl.ds(0, ALIGN), :] = zero_head
    hpad_ref[pl.ds(0, ALIGN), :] = zero_head
    xpad_ref[pl.ds(M + ALIGN, ALIGN), :] = zero_head
    hpad_ref[pl.ds(M + ALIGN, ALIGN), :] = zero_head
    for b in range(NB):
        xpad_ref[pl.ds(b * Lw + ALIGN + L, gap), :] = zero_gap
        hpad_ref[pl.ds(b * Lw + ALIGN + L, gap), :] = zero_gap

    # Scatter the NB samples into the flat bf16 scratch (aligned stores,
    # single f32->bf16 cast per sample).
    for b in range(NB):
        xpad_ref[pl.ds(b * Lw + ALIGN, L), :] = x_ref[b].astype(jnp.bfloat16)

    s1 = s1_ref[...]
    b1 = b1_ref[...]
    s2 = s2_ref[...]
    b2 = b2_ref[...]

    # ---- conv1: 7 shifted (M, Cp) @ (Cp, Cp) bf16 matmuls, f32 accumulation ----
    acc = jnp.dot(xpad_ref[pl.ds(off, M), :], w1_ref[0],
                  preferred_element_type=jnp.float32)
    for k in range(1, K):
        acc = acc + jnp.dot(xpad_ref[pl.ds(off + k, M), :], w1_ref[k],
                            preferred_element_type=jnp.float32)

    # ---- BN1 (folded) + SiLU (f32) on valid rows; re-halo as bf16 ----
    for b in range(NB):
        h = _silu(acc[b * Lw:b * Lw + L] * s1 + b1)
        hpad_ref[pl.ds(b * Lw + ALIGN, L), :] = h.astype(jnp.bfloat16)

    # ---- conv2 on the re-haloed intermediate ----
    acc2 = jnp.dot(hpad_ref[pl.ds(off, M), :], w2_ref[0],
                   preferred_element_type=jnp.float32)
    for k in range(1, K):
        acc2 = acc2 + jnp.dot(hpad_ref[pl.ds(off + k, M), :], w2_ref[k],
                              preferred_element_type=jnp.float32)

    # ---- BN2 (folded) + residual + SiLU (all f32), lane-dense store ----
    for b in range(NB):
        y = acc2[b * Lw:b * Lw + L] * s2 + b2 + x_ref[b]   # inplanes==planes, stride 1
        out_ref[b] = _silu(y).astype(out_ref.dtype)


def _vmem_capacity_bytes():
    """Physical per-TensorCore VMEM; conservative fallback if the query fails."""
    try:
        info = pltpu.get_tpu_info()
        cap = getattr(info, "vmem_capacity_bytes", None)
        if cap:
            return int(cap)
    except Exception:
        pass
    return 64 << 20   # v7x has 64 MiB / TC -- safe on every generation


def basic_block7x7(x_ncl, w1_oik, gamma1, beta1, mean1, var1,
                   w2_oik, gamma2, beta2, mean2, var2,
                   eps=1e-5, batch_block=4):
    """x_ncl: (N, C, L) f32 (PyTorch layout). Returns (N, C, L) f32."""
    N, C, L = x_ncl.shape
    P = w1_oik.shape[0]
    assert w1_oik.shape == (P, C, K) and w2_oik.shape == (P, P, K)
    assert C == P, "residual path requires inplanes == planes (downsample=None)"

    Cp = _round_up(C, LANES)                     # lane-dense channel width
    Lw = _round_up(L + 2 * PAD, ALIGN)           # per-sample window in flat scratch

    # Samples per grid step: small enough that the parallel grid has >= 2 steps
    # when N > 1 (megacore / v7x), and shrunk further if VMEM would not fit.
    NB = max(1, min(int(batch_block), -(-N // 2)))

    def vmem_needed(nb):
        m = nb * Lw
        r = m + 2 * ALIGN
        return (2 * 2 * nb * L * Cp * 4          # in + out blocks, double buffered
                + 2 * 2 * K * Cp * Cp * 2        # conv weights, double buffered
                + 2 * r * Cp * 2                 # bf16 halo scratches
                + 2 * m * Cp * 4                 # f32 matmul accumulators
                + (4 << 20))                     # headroom / internal scratch

    budget = int(_vmem_capacity_bytes() * 0.85)
    while NB > 1 and vmem_needed(NB) > budget:
        NB //= 2
    vmem_limit = int(min(max(vmem_needed(NB), 32 << 20), budget))

    Np = _round_up(N, NB)

    # ---- fold BN running stats (inference mode) into per-channel scale/bias ----
    s1 = gamma1 / jnp.sqrt(var1 + eps)
    b1 = beta1 - mean1 * s1
    s2 = gamma2 / jnp.sqrt(var2 + eps)
    b2 = beta2 - mean2 * s2

    def prep_w(w_oik):
        w = jnp.transpose(w_oik, (2, 1, 0)).astype(jnp.float32)   # (K, Cin, Cout)
        w = jnp.pad(w, ((0, 0), (0, Cp - w.shape[1]), (0, Cp - w.shape[2])))
        return w.astype(jnp.bfloat16)                             # bf16 MXU operand

    def prep_vec(v):
        return jnp.pad(v.astype(jnp.float32), (0, Cp - v.shape[0])).reshape(1, Cp)

    w1_p, w2_p = prep_w(w1_oik), prep_w(w2_oik)
    s1_p, b1_p = prep_vec(s1), prep_vec(b1)
    s2_p, b2_p = prep_vec(s2), prep_vec(b2)

    # NCL -> NLC (channels on lanes); pad channels to Cp and batch to Np.
    # No length padding in HBM -- the halo lives in the in-kernel scratch.
    x_nlc = jnp.transpose(x_ncl, (0, 2, 1)).astype(jnp.float32)
    x_nlc = jnp.pad(x_nlc, ((0, Np - N), (0, 0), (0, Cp - C)))

    kernel = functools.partial(basic_block_kernel, L=L, NB=NB, Lw=Lw)
    scratch_rows = NB * Lw + 2 * ALIGN

    cost = pl.CostEstimate(
        flops=int(4 * K * Np * L * Cp * Cp),             # 2 convs x 2 ops x K taps
        transcendentals=int(2 * Np * L * Cp),            # two sigmoids
        bytes_accessed=int(8 * Np * L * Cp + 4 * K * Cp * Cp + 16 * Cp))

    out_nlc = pl.pallas_call(
        kernel,
        out_shape=jax.ShapeDtypeStruct((Np, L, Cp), jnp.float32),
        grid_spec=pltpu.PrefetchScalarGridSpec(
            num_scalar_prefetch=0,
            grid=(Np // NB,),
            in_specs=[
                pl.BlockSpec((NB, L, Cp), lambda n: (n, 0, 0)),
                pl.BlockSpec((K, Cp, Cp), lambda n: (0, 0, 0)),
                pl.BlockSpec((1, Cp), lambda n: (0, 0)),
                pl.BlockSpec((1, Cp), lambda n: (0, 0)),
                pl.BlockSpec((K, Cp, Cp), lambda n: (0, 0, 0)),
                pl.BlockSpec((1, Cp), lambda n: (0, 0)),
                pl.BlockSpec((1, Cp), lambda n: (0, 0)),
            ],
            out_specs=pl.BlockSpec((NB, L, Cp), lambda n: (n, 0, 0)),
            scratch_shapes=[pltpu.VMEM((scratch_rows, Cp), jnp.bfloat16),
                            pltpu.VMEM((scratch_rows, Cp), jnp.bfloat16)],
        ),
        compiler_params=pltpu.CompilerParams(
            dimension_semantics=("parallel",),
            vmem_limit_bytes=vmem_limit),
        cost_estimate=cost,
    )(x_nlc, w1_p, s1_p, b1_p, w2_p, s2_p, b2_p)

    return jnp.transpose(out_nlc[:N, :, :C], (0, 2, 1))   # back to NCL


# ---------------- pure-JAX reference (for verification) ----------------
def _conv1d_bf16_ref(x_ncl, w_oik):
    # Conv1d(k=7, stride=1, padding=3, bias=False) with bf16 operands and
    # f32 accumulation -- mirrors the kernel's MXU numerics.
    return jax.lax.conv_general_dilated(
        x_ncl.astype(jnp.bfloat16), w_oik.astype(jnp.bfloat16),
        window_strides=(1,), padding=((PAD, PAD),),
        dimension_numbers=("NCW", "OIW", "NCW"),
        preferred_element_type=jnp.float32)


def basic_block7x7_ref(x_ncl, w1_oik, gamma1, beta1, mean1, var1,
                       w2_oik, gamma2, beta2, mean2, var2, eps=1e-5):
    s1 = gamma1 / jnp.sqrt(var1 + eps)
    b1 = beta1 - mean1 * s1
    s2 = gamma2 / jnp.sqrt(var2 + eps)
    b2 = beta2 - mean2 * s2
    y = _conv1d_bf16_ref(x_ncl, w1_oik)
    y = _silu(y * s1[None, :, None] + b1[None, :, None])
    y = _conv1d_bf16_ref(y, w2_oik)
    y = y * s2[None, :, None] + b2[None, :, None] + x_ncl
    return _silu(y)


if __name__ == "__main__":
    key = jax.random.PRNGKey(0)
    N, C, L = 2, 4, 16          # inplanes7 = planes = 4, stride = 1
    P = C
    eps = 1e-5

    (k_x, k_w1, k_w2, k_g1, k_b1, k_g2, k_b2,
     k_m1, k_v1, k_m2, k_v2) = jax.random.split(key, 11)

    x = jax.random.normal(k_x, (N, C, L), jnp.float32)

    # Conv weights in PyTorch layout (out, in, K); no bias.
    w1_oik = jax.random.normal(k_w1, (P, C, K), jnp.float32) * 0.2
    w2_oik = jax.random.normal(k_w2, (P, P, K), jnp.float32) * 0.2

    # BatchNorm1d parameters + running stats (inference mode).
    gamma1 = 1.0 + 0.1 * jax.random.normal(k_g1, (P,), jnp.float32)
    beta1 = 0.1 * jax.random.normal(k_b1, (P,), jnp.float32)
    mean1 = 0.1 * jax.random.normal(k_m1, (P,), jnp.float32)
    var1 = jnp.abs(jax.random.normal(k_v1, (P,), jnp.float32)) + 0.5
    gamma2 = 1.0 + 0.1 * jax.random.normal(k_g2, (P,), jnp.float32)
    beta2 = 0.1 * jax.random.normal(k_b2, (P,), jnp.float32)
    mean2 = 0.1 * jax.random.normal(k_m2, (P,), jnp.float32)
    var2 = jnp.abs(jax.random.normal(k_v2, (P,), jnp.float32)) + 0.5

    out = basic_block7x7(x, w1_oik, gamma1, beta1, mean1, var1,
                         w2_oik, gamma2, beta2, mean2, var2, eps=eps)
    out = jax.block_until_ready(out)

    ref = basic_block7x7_ref(x, w1_oik, gamma1, beta1, mean1, var1,
                             w2_oik, gamma2, beta2, mean2, var2, eps=eps)
    assert out.shape == (N, C, L)
    err = jnp.max(jnp.abs(out - ref))
    assert jnp.allclose(out, ref, atol=2e-2, rtol=2e-2), f"max err {err}"

    print("KERNEL_OK")
</pallas_src>

<mosaic_0001>
module attributes {stable_mosaic.version = 11 : i64} {
  func.func @basic_block_kernel(%arg0: i32, %arg1: memref<1x16x128xf32, #tpu.memory_space<vmem>>, %arg2: memref<7x128x128xbf16, #tpu.memory_space<vmem>>, %arg3: memref<1x128xf32, #tpu.memory_space<vmem>>, %arg4: memref<1x128xf32, #tpu.memory_space<vmem>>, %arg5: memref<7x128x128xbf16, #tpu.memory_space<vmem>>, %arg6: memref<1x128xf32, #tpu.memory_space<vmem>>, %arg7: memref<1x128xf32, #tpu.memory_space<vmem>>, %arg8: memref<1x16x128xf32, #tpu.memory_space<vmem>>, %arg9: memref<64x128xbf16, #tpu.memory_space<vmem>>, %arg10: memref<64x128xbf16, #tpu.memory_space<vmem>>) attributes {dimension_semantics = [#tpu.dimension_semantics<parallel>], iteration_bounds = array<i64: 2>, scalar_prefetch = 0 : i64, scratch_operands = 2 : i64, tpu.core_type = #tpu.core_type<tc>, window_params = [{transform_indices = @transform_0, window_bounds = array<i64: 1, 16, 128>}, {pipeline_mode = #tpu.pipeline_mode<synchronous>, transform_indices = @transform_1, window_bounds = array<i64: 7, 128, 128>}, {pipeline_mode = #tpu.pipeline_mode<synchronous>, transform_indices = @transform_2, window_bounds = array<i64: 1, 128>}, {pipeline_mode = #tpu.pipeline_mode<synchronous>, transform_indices = @transform_3, window_bounds = array<i64: 1, 128>}, {pipeline_mode = #tpu.pipeline_mode<synchronous>, transform_indices = @transform_4, window_bounds = array<i64: 7, 128, 128>}, {pipeline_mode = #tpu.pipeline_mode<synchronous>, transform_indices = @transform_5, window_bounds = array<i64: 1, 128>}, {pipeline_mode = #tpu.pipeline_mode<synchronous>, transform_indices = @transform_6, window_bounds = array<i64: 1, 128>}, {transform_indices = @transform_7, window_bounds = array<i64: 1, 16, 128>}]} {
    %cst = arith.constant 0.000000e+00 : bf16
    %0 = vector.broadcast %cst : bf16 to vector<16x128xbf16>
    %cst_0 = arith.constant 0.000000e+00 : bf16
    %1 = vector.broadcast %cst_0 : bf16 to vector<16x128xbf16>
    %c0 = arith.constant 0 : index
    %c0_1 = arith.constant 0 : index
    %2 = vector.load %arg9[%c0, %c0_1] : memref<64x128xbf16, #tpu.memory_space<vmem>>, vector<16x128xbf16>
    tpu.vector_store %arg9[%c0, %c0_1], %0 {strides = array<i32>} : memref<64x128xbf16, #tpu.memory_space<vmem>>, vector<16x128xbf16>,
    %c0_2 = arith.constant 0 : index
    %c0_3 = arith.constant 0 : index
    %3 = vector.load %arg10[%c0_2, %c0_3] : memref<64x128xbf16, #tpu.memory_space<vmem>>, vector<16x128xbf16>
    tpu.vector_store %arg10[%c0_2, %c0_3], %0 {strides = array<i32>} : memref<64x128xbf16, #tpu.memory_space<vmem>>, vector<16x128xbf16>,
    %c48 = arith.constant 48 : index
    %c0_4 = arith.constant 0 : index
    %4 = vector.load %arg9[%c48, %c0_4] : memref<64x128xbf16, #tpu.memory_space<vmem>>, vector<16x128xbf16>
    tpu.vector_store %arg9[%c48, %c0_4], %0 {strides = array<i32>} : memref<64x128xbf16, #tpu.memory_space<vmem>>, vector<16x128xbf16>,
    %c48_5 = arith.constant 48 : index
    %c0_6 = arith.constant 0 : index
    %5 = vector.load %arg10[%c48_5, %c0_6] : memref<64x128xbf16, #tpu.memory_space<vmem>>, vector<16x128xbf16>
    tpu.vector_store %arg10[%c48_5, %c0_6], %0 {strides = array<i32>} : memref<64x128xbf16, #tpu.memory_space<vmem>>, vector<16x128xbf16>,
    %c32 = arith.constant 32 : index
    %c0_7 = arith.constant 0 : index
    %6 = vector.load %arg9[%c32, %c0_7] : memref<64x128xbf16, #tpu.memory_space<vmem>>, vector<16x128xbf16>
    tpu.vector_store %arg9[%c32, %c0_7], %1 {strides = array<i32>} : memref<64x128xbf16, #tpu.memory_space<vmem>>, vector<16x128xbf16>,
    %c32_8 = arith.constant 32 : index
    %c0_9 = arith.constant 0 : index
    %7 = vector.load %arg10[%c32_8, %c0_9] : memref<64x128xbf16, #tpu.memory_space<vmem>>, vector<16x128xbf16>
    tpu.vector_store %arg10[%c32_8, %c0_9], %1 {strides = array<i32>} : memref<64x128xbf16, #tpu.memory_space<vmem>>, vector<16x128xbf16>,
    %c0_10 = arith.constant 0 : index
    %c0_11 = arith.constant 0 : index
    %c0_12 = arith.constant 0 : index
    %8 = vector.load %arg1[%c0_10, %c0_11, %c0_12] : memref<1x16x128xf32, #tpu.memory_space<vmem>>, vector<1x16x128xf32>
    %9 = vector.shape_cast %8 : vector<1x16x128xf32> to vector<16x128xf32>
    %10 = arith.truncf %9 : vector<16x128xf32> to vector<16x128xbf16>
    %c16 = arith.constant 16 : index
    %c0_13 = arith.constant 0 : index
    %11 = vector.load %arg9[%c16, %c0_13] : memref<64x128xbf16, #tpu.memory_space<vmem>>, vector<16x128xbf16>
    tpu.vector_store %arg9[%c16, %c0_13], %10 {strides = array<i32>} : memref<64x128xbf16, #tpu.memory_space<vmem>>, vector<16x128xbf16>,
    %c0_14 = arith.constant 0 : index
    %c0_15 = arith.constant 0 : index
    %12 = vector.load %arg3[%c0_14, %c0_15] : memref<1x128xf32, #tpu.memory_space<vmem>>, vector<1x128xf32>
    %c0_16 = arith.constant 0 : index
    %c0_17 = arith.constant 0 : index
    %13 = vector.load %arg4[%c0_16, %c0_17] : memref<1x128xf32, #tpu.memory_space<vmem>>, vector<1x128xf32>
    %c0_18 = arith.constant 0 : index
    %c0_19 = arith.constant 0 : index
    %14 = vector.load %arg6[%c0_18, %c0_19] : memref<1x128xf32, #tpu.memory_space<vmem>>, vector<1x128xf32>
    %c0_20 = arith.constant 0 : index
    %c0_21 = arith.constant 0 : index
    %15 = vector.load %arg7[%c0_20, %c0_21] : memref<1x128xf32, #tpu.memory_space<vmem>>, vector<1x128xf32>
    %c13 = arith.constant 13 : index
    %c0_22 = arith.constant 0 : index
    %16 = vector.load %arg9[%c13, %c0_22] : memref<64x128xbf16, #tpu.memory_space<vmem>>, vector<32x128xbf16>
    %c0_23 = arith.constant 0 : index
    %c0_24 = arith.constant 0 : index
    %c0_25 = arith.constant 0 : index
    %17 = vector.load %arg2[%c0_23, %c0_24, %c0_25] : memref<7x128x128xbf16, #tpu.memory_space<vmem>>, vector<1x128x128xbf16>
    %18 = vector.shape_cast %17 : vector<1x128x128xbf16> to vector<128x128xbf16>
    %cst_26 = arith.constant dense<0.000000e+00> : vector<32x128xf32>
    %19 = tpu.matmul %16, %18, %cst_26 {dimension_numbers = #tpu.dot_dimension_numbers<[1], [0], [0], [1], [0, 0, 1, 1], [], []>} : vector<32x128xbf16>, vector<128x128xbf16>, vector<32x128xf32> -> vector<32x128xf32>
    %c14 = arith.constant 14 : index
    %c0_27 = arith.constant 0 : index
    %20 = vector.load %arg9[%c14, %c0_27] : memref<64x128xbf16, #tpu.memory_space<vmem>>, vector<32x128xbf16>
    %c1 = arith.constant 1 : index
    %c0_28 = arith.constant 0 : index
    %c0_29 = arith.constant 0 : index
    %21 = vector.load %arg2[%c1, %c0_28, %c0_29] : memref<7x128x128xbf16, #tpu.memory_space<vmem>>, vector<1x128x128xbf16>
    %22 = vector.shape_cast %21 : vector<1x128x128xbf16> to vector<128x128xbf16>
    %cst_30 = arith.constant dense<0.000000e+00> : vector<32x128xf32>
    %23 = tpu.matmul %20, %22, %cst_30 {dimension_numbers = #tpu.dot_dimension_numbers<[1], [0], [0], [1], [0, 0, 1, 1], [], []>} : vector<32x128xbf16>, vector<128x128xbf16>, vector<32x128xf32> -> vector<32x128xf32>
    %24 = arith.addf %19, %23 : vector<32x128xf32>
    %c15 = arith.constant 15 : index
    %c0_31 = arith.constant 0 : index
    %25 = vector.load %arg9[%c15, %c0_31] : memref<64x128xbf16, #tpu.memory_space<vmem>>, vector<32x128xbf16>
    %c2 = arith.constant 2 : index
    %c0_32 = arith.constant 0 : index
    %c0_33 = arith.constant 0 : index
    %26 = vector.load %arg2[%c2, %c0_32, %c0_33] : memref<7x128x128xbf16, #tpu.memory_space<vmem>>, vector<1x128x128xbf16>
    %27 = vector.shape_cast %26 : vector<1x128x128xbf16> to vector<128x128xbf16>
    %cst_34 = arith.constant dense<0.000000e+00> : vector<32x128xf32>
    %28 = tpu.matmul %25, %27, %cst_34 {dimension_numbers = #tpu.dot_dimension_numbers<[1], [0], [0], [1], [0, 0, 1, 1], [], []>} : vector<32x128xbf16>, vector<128x128xbf16>, vector<32x128xf32> -> vector<32x128xf32>
    %29 = arith.addf %24, %28 : vector<32x128xf32>
    %c16_35 = arith.constant 16 : index
    %c0_36 = arith.constant 0 : index
    %30 = vector.load %arg9[%c16_35, %c0_36] : memref<64x128xbf16, #tpu.memory_space<vmem>>, vector<32x128xbf16>
    %c3 = arith.constant 3 : index
    %c0_37 = arith.constant 0 : index
    %c0_38 = arith.constant 0 : index
    %31 = vector.load %arg2[%c3, %c0_37, %c0_38] : memref<7x128x128xbf16, #tpu.memory_space<vmem>>, vector<1x128x128xbf16>
    %32 = vector.shape_cast %31 : vector<1x128x128xbf16> to vector<128x128xbf16>
    %cst_39 = arith.constant dense<0.000000e+00> : vector<32x128xf32>
    %33 = tpu.matmul %30, %32, %cst_39 {dimension_numbers = #tpu.dot_dimension_numbers<[1], [0], [0], [1], [0, 0, 1, 1], [], []>} : vector<32x128xbf16>, vector<128x128xbf16>, vector<32x128xf32> -> vector<32x128xf32>
    %34 = arith.addf %29, %33 : vector<32x128xf32>
    %c17 = arith.constant 17 : index
    %c0_40 = arith.constant 0 : index
    %35 = vector.load %arg9[%c17, %c0_40] : memref<64x128xbf16, #tpu.memory_space<vmem>>, vector<32x128xbf16>
    %c4 = arith.constant 4 : index
    %c0_41 = arith.constant 0 : index
    %c0_42 = arith.constant 0 : index
    %36 = vector.load %arg2[%c4, %c0_41, %c0_42] : memref<7x128x128xbf16, #tpu.memory_space<vmem>>, vector<1x128x128xbf16>
    %37 = vector.shape_cast %36 : vector<1x128x128xbf16> to vector<128x128xbf16>
    %cst_43 = arith.constant dense<0.000000e+00> : vector<32x128xf32>
    %38 = tpu.matmul %35, %37, %cst_43 {dimension_numbers = #tpu.dot_dimension_numbers<[1], [0], [0], [1], [0, 0, 1, 1], [], []>} : vector<32x128xbf16>, vector<128x128xbf16>, vector<32x128xf32> -> vector<32x128xf32>
    %39 = arith.addf %34, %38 : vector<32x128xf32>
    %c18 = arith.constant 18 : index
    %c0_44 = arith.constant 0 : index
    %40 = vector.load %arg9[%c18, %c0_44] : memref<64x128xbf16, #tpu.memory_space<vmem>>, vector<32x128xbf16>
    %c5 = arith.constant 5 : index
    %c0_45 = arith.constant 0 : index
    %c0_46 = arith.constant 0 : index
    %41 = vector.load %arg2[%c5, %c0_45, %c0_46] : memref<7x128x128xbf16, #tpu.memory_space<vmem>>, vector<1x128x128xbf16>
    %42 = vector.shape_cast %41 : vector<1x128x128xbf16> to vector<128x128xbf16>
    %cst_47 = arith.constant dense<0.000000e+00> : vector<32x128xf32>
    %43 = tpu.matmul %40, %42, %cst_47 {dimension_numbers = #tpu.dot_dimension_numbers<[1], [0], [0], [1], [0, 0, 1, 1], [], []>} : vector<32x128xbf16>, vector<128x128xbf16>, vector<32x128xf32> -> vector<32x128xf32>
    %44 = arith.addf %39, %43 : vector<32x128xf32>
    %c19 = arith.constant 19 : index
    %c0_48 = arith.constant 0 : index
    %45 = vector.load %arg9[%c19, %c0_48] : memref<64x128xbf16, #tpu.memory_space<vmem>>, vector<32x128xbf16>
    %c6 = arith.constant 6 : index
    %c0_49 = arith.constant 0 : index
    %c0_50 = arith.constant 0 : index
    %46 = vector.load %arg2[%c6, %c0_49, %c0_50] : memref<7x128x128xbf16, #tpu.memory_space<vmem>>, vector<1x128x128xbf16>
    %47 = vector.shape_cast %46 : vector<1x128x128xbf16> to vector<128x128xbf16>
    %cst_51 = arith.constant dense<0.000000e+00> : vector<32x128xf32>
    %48 = tpu.matmul %45, %47, %cst_51 {dimension_numbers = #tpu.dot_dimension_numbers<[1], [0], [0], [1], [0, 0, 1, 1], [], []>} : vector<32x128xbf16>, vector<128x128xbf16>, vector<32x128xf32> -> vector<32x128xf32>
    %49 = arith.addf %44, %48 : vector<32x128xf32>
    %50 = vector.extract_strided_slice %49 {offsets = [0, 0], sizes = [16, 128], strides = [1, 1]} : vector<32x128xf32> to vector<16x128xf32>
    %51 = vector.broadcast %12 : vector<1x128xf32> to vector<16x128xf32>
    %52 = arith.mulf %50, %51 : vector<16x128xf32>
    %53 = vector.broadcast %13 : vector<1x128xf32> to vector<16x128xf32>
    %54 = arith.addf %52, %53 : vector<16x128xf32>
    %55 = arith.negf %54 : vector<16x128xf32>
    %56 = math.exp %55 : vector<16x128xf32>
    %cst_52 = arith.constant 1.000000e+00 : f32
    %57 = vector.broadcast %cst_52 : f32 to vector<16x128xf32>
    %58 = arith.addf %57, %56 : vector<16x128xf32>
    %59 = arith.divf %57, %58 : vector<16x128xf32>
    %60 = arith.mulf %54, %59 : vector<16x128xf32>
    %61 = arith.truncf %60 : vector<16x128xf32> to vector<16x128xbf16>
    %c16_53 = arith.constant 16 : index
    %c0_54 = arith.constant 0 : index
    %62 = vector.load %arg10[%c16_53, %c0_54] : memref<64x128xbf16, #tpu.memory_space<vmem>>, vector<16x128xbf16>
    tpu.vector_store %arg10[%c16_53, %c0_54], %61 {strides = array<i32>} : memref<64x128xbf16, #tpu.memory_space<vmem>>, vector<16x128xbf16>,
    %c13_55 = arith.constant 13 : index
    %c0_56 = arith.constant 0 : index
    %63 = vector.load %arg10[%c13_55, %c0_56] : memref<64x128xbf16, #tpu.memory_space<vmem>>, vector<32x128xbf16>
    %c0_57 = arith.constant 0 : index
    %c0_58 = arith.constant 0 : index
    %c0_59 = arith.constant 0 : index
    %64 = vector.load %arg5[%c0_57, %c0_58, %c0_59] : memref<7x128x128xbf16, #tpu.memory_space<vmem>>, vector<1x128x128xbf16>
    %65 = vector.shape_cast %64 : vector<1x128x128xbf16> to vector<128x128xbf16>
    %cst_60 = arith.constant dense<0.000000e+00> : vector<32x128xf32>
    %66 = tpu.matmul %63, %65, %cst_60 {dimension_numbers = #tpu.dot_dimension_numbers<[1], [0], [0], [1], [0, 0, 1, 1], [], []>} : vector<32x128xbf16>, vector<128x128xbf16>, vector<32x128xf32> -> vector<32x128xf32>
    %c14_61 = arith.constant 14 : index
    %c0_62 = arith.constant 0 : index
    %67 = vector.load %arg10[%c14_61, %c0_62] : memref<64x128xbf16, #tpu.memory_space<vmem>>, vector<32x128xbf16>
    %c1_63 = arith.constant 1 : index
    %c0_64 = arith.constant 0 : index
    %c0_65 = arith.constant 0 : index
    %68 = vector.load %arg5[%c1_63, %c0_64, %c0_65] : memref<7x128x128xbf16, #tpu.memory_space<vmem>>, vector<1x128x128xbf16>
    %69 = vector.shape_cast %68 : vector<1x128x128xbf16> to vector<128x128xbf16>
    %cst_66 = arith.constant dense<0.000000e+00> : vector<32x128xf32>
    %70 = tpu.matmul %67, %69, %cst_66 {dimension_numbers = #tpu.dot_dimension_numbers<[1], [0], [0], [1], [0, 0, 1, 1], [], []>} : vector<32x128xbf16>, vector<128x128xbf16>, vector<32x128xf32> -> vector<32x128xf32>
    %71 = arith.addf %66, %70 : vector<32x128xf32>
    %c15_67 = arith.constant 15 : index
    %c0_68 = arith.constant 0 : index
    %72 = vector.load %arg10[%c15_67, %c0_68] : memref<64x128xbf16, #tpu.memory_space<vmem>>, vector<32x128xbf16>
    %c2_69 = arith.constant 2 : index
    %c0_70 = arith.constant 0 : index
    %c0_71 = arith.constant 0 : index
    %73 = vector.load %arg5[%c2_69, %c0_70, %c0_71] : memref<7x128x128xbf16, #tpu.memory_space<vmem>>, vector<1x128x128xbf16>
    %74 = vector.shape_cast %73 : vector<1x128x128xbf16> to vector<128x128xbf16>
    %cst_72 = arith.constant dense<0.000000e+00> : vector<32x128xf32>
    %75 = tpu.matmul %72, %74, %cst_72 {dimension_numbers = #tpu.dot_dimension_numbers<[1], [0], [0], [1], [0, 0, 1, 1], [], []>} : vector<32x128xbf16>, vector<128x128xbf16>, vector<32x128xf32> -> vector<32x128xf32>
    %76 = arith.addf %71, %75 : vector<32x128xf32>
    %c16_73 = arith.constant 16 : index
    %c0_74 = arith.constant 0 : index
    %77 = vector.load %arg10[%c16_73, %c0_74] : memref<64x128xbf16, #tpu.memory_space<vmem>>, vector<32x128xbf16>
    %c3_75 = arith.constant 3 : index
    %c0_76 = arith.constant 0 : index
    %c0_77 = arith.constant 0 : index
    %78 = vector.load %arg5[%c3_75, %c0_76, %c0_77] : memref<7x128x128xbf16, #tpu.memory_space<vmem>>, vector<1x128x128xbf16>
    %79 = vector.shape_cast %78 : vector<1x128x128xbf16> to vector<128x128xbf16>
    %cst_78 = arith.constant dense<0.000000e+00> : vector<32x128xf32>
    %80 = tpu.matmul %77, %79, %cst_78 {dimension_numbers = #tpu.dot_dimension_numbers<[1], [0], [0], [1], [0, 0, 1, 1], [], []>} : vector<32x128xbf16>, vector<128x128xbf16>, vector<32x128xf32> -> vector<32x128xf32>
    %81 = arith.addf %76, %80 : vector<32x128xf32>
    %c17_79 = arith.constant 17 : index
    %c0_80 = arith.constant 0 : index
    %82 = vector.load %arg10[%c17_79, %c0_80] : memref<64x128xbf16, #tpu.memory_space<vmem>>, vector<32x128xbf16>
    %c4_81 = arith.constant 4 : index
    %c0_82 = arith.constant 0 : index
    %c0_83 = arith.constant 0 : index
    %83 = vector.load %arg5[%c4_81, %c0_82, %c0_83] : memref<7x128x128xbf16, #tpu.memory_space<vmem>>, vector<1x128x128xbf16>
    %84 = vector.shape_cast %83 : vector<1x128x128xbf16> to vector<128x128xbf16>
    %cst_84 = arith.constant dense<0.000000e+00> : vector<32x128xf32>
    %85 = tpu.matmul %82, %84, %cst_84 {dimension_numbers = #tpu.dot_dimension_numbers<[1], [0], [0], [1], [0, 0, 1, 1], [], []>} : vector<32x128xbf16>, vector<128x128xbf16>, vector<32x128xf32> -> vector<32x128xf32>
    %86 = arith.addf %81, %85 : vector<32x128xf32>
    %c18_85 = arith.constant 18 : index
    %c0_86 = arith.constant 0 : index
    %87 = vector.load %arg10[%c18_85, %c0_86] : memref<64x128xbf16, #tpu.memory_space<vmem>>, vector<32x128xbf16>
    %c5_87 = arith.constant 5 : index
    %c0_88 = arith.constant 0 : index
    %c0_89 = arith.constant 0 : index
    %88 = vector.load %arg5[%c5_87, %c0_88, %c0_89] : memref<7x128x128xbf16, #tpu.memory_space<vmem>>, vector<1x128x128xbf16>
    %89 = vector.shape_cast %88 : vector<1x128x128xbf16> to vector<128x128xbf16>
    %cst_90 = arith.constant dense<0.000000e+00> : vector<32x128xf32>
    %90 = tpu.matmul %87, %89, %cst_90 {dimension_numbers = #tpu.dot_dimension_numbers<[1], [0], [0], [1], [0, 0, 1, 1], [], []>} : vector<32x128xbf16>, vector<128x128xbf16>, vector<32x128xf32> -> vector<32x128xf32>
    %91 = arith.addf %86, %90 : vector<32x128xf32>
    %c19_91 = arith.constant 19 : index
    %c0_92 = arith.constant 0 : index
    %92 = vector.load %arg10[%c19_91, %c0_92] : memref<64x128xbf16, #tpu.memory_space<vmem>>, vector<32x128xbf16>
    %c6_93 = arith.constant 6 : index
    %c0_94 = arith.constant 0 : index
    %c0_95 = arith.constant 0 : index
    %93 = vector.load %arg5[%c6_93, %c0_94, %c0_95] : memref<7x128x128xbf16, #tpu.memory_space<vmem>>, vector<1x128x128xbf16>
    %94 = vector.shape_cast %93 : vector<1x128x128xbf16> to vector<128x128xbf16>
    %cst_96 = arith.constant dense<0.000000e+00> : vector<32x128xf32>
    %95 = tpu.matmul %92, %94, %cst_96 {dimension_numbers = #tpu.dot_dimension_numbers<[1], [0], [0], [1], [0, 0, 1, 1], [], []>} : vector<32x128xbf16>, vector<128x128xbf16>, vector<32x128xf32> -> vector<32x128xf32>
    %96 = arith.addf %91, %95 : vector<32x128xf32>
    %97 = vector.extract_strided_slice %96 {offsets = [0, 0], sizes = [16, 128], strides = [1, 1]} : vector<32x128xf32> to vector<16x128xf32>
    %98 = vector.broadcast %14 : vector<1x128xf32> to vector<16x128xf32>
    %99 = arith.mulf %97, %98 : vector<16x128xf32>
    %100 = vector.broadcast %15 : vector<1x128xf32> to vector<16x128xf32>
    %101 = arith.addf %99, %100 : vector<16x128xf32>
    %c0_97 = arith.constant 0 : index
    %c0_98 = arith.constant 0 : index
    %c0_99 = arith.constant 0 : index
    %102 = vector.load %arg1[%c0_97, %c0_98, %c0_99] : memref<1x16x128xf32, #tpu.memory_space<vmem>>, vector<1x16x128xf32>
    %103 = vector.shape_cast %102 : vector<1x16x128xf32> to vector<16x128xf32>
    %104 = arith.addf %101, %103 : vector<16x128xf32>
    %105 = arith.negf %104 : vector<16x128xf32>
    %106 = math.exp %105 : vector<16x128xf32>
    %cst_100 = arith.constant 1.000000e+00 : f32
    %107 = vector.broadcast %cst_100 : f32 to vector<16x128xf32>
    %108 = arith.addf %107, %106 : vector<16x128xf32>
    %109 = arith.divf %107, %108 : vector<16x128xf32>
    %110 = arith.mulf %104, %109 : vector<16x128xf32>
    %c0_101 = arith.constant 0 : index
    %c0_102 = arith.constant 0 : index
    %c0_103 = arith.constant 0 : index
    %111 = vector.load %arg8[%c0_101, %c0_102, %c0_103] : memref<1x16x128xf32, #tpu.memory_space<vmem>>, vector<1x16x128xf32>
    %112 = vector.shape_cast %111 : vector<1x16x128xf32> to vector<16x128xf32>
    %113 = vector.shape_cast %110 : vector<16x128xf32> to vector<1x16x128xf32>
    tpu.vector_store %arg8[%c0_101, %c0_102, %c0_103], %113 {strides = array<i32>} : memref<1x16x128xf32, #tpu.memory_space<vmem>>, vector<1x16x128xf32>,
    return
  }
  func.func @transform_0(%arg0: i32) -> (i32, i32, i32) {
    %c0_i32 = arith.constant 0 : i32
    %c0_i32_0 = arith.constant 0 : i32
    %c0_i32_1 = arith.constant 0 : i32
    return %arg0, %c0_i32, %c0_i32_0 : i32, i32, i32
  }
  func.func @transform_1(%arg0: i32) -> (i32, i32, i32) {
    %c0_i32 = arith.constant 0 : i32
    %c0_i32_0 = arith.constant 0 : i32
    %c0_i32_1 = arith.constant 0 : i32
    %c0_i32_2 = arith.constant 0 : i32
    return %c0_i32, %c0_i32_0, %c0_i32_1 : i32, i32, i32
  }
  func.func @transform_2(%arg0: i32) -> (i32, i32) {
    %c0_i32 = arith.constant 0 : i32
    %c0_i32_0 = arith.constant 0 : i32
    %c0_i32_1 = arith.constant 0 : i32
    return %c0_i32, %c0_i32_0 : i32, i32
  }
  func.func @transform_3(%arg0: i32) -> (i32, i32) {
    %c0_i32 = arith.constant 0 : i32
    %c0_i32_0 = arith.constant 0 : i32
    %c0_i32_1 = arith.constant 0 : i32
    return %c0_i32, %c0_i32_0 : i32, i32
  }
  func.func @transform_4(%arg0: i32) -> (i32, i32, i32) {
    %c0_i32 = arith.constant 0 : i32
    %c0_i32_0 = arith.constant 0 : i32
    %c0_i32_1 = arith.constant 0 : i32
    %c0_i32_2 = arith.constant 0 : i32
    return %c0_i32, %c0_i32_0, %c0_i32_1 : i32, i32, i32
  }
  func.func @transform_5(%arg0: i32) -> (i32, i32) {
    %c0_i32 = arith.constant 0 : i32
    %c0_i32_0 = arith.constant 0 : i32
    %c0_i32_1 = arith.constant 0 : i32
    return %c0_i32, %c0_i32_0 : i32, i32
  }
  func.func @transform_6(%arg0: i32) -> (i32, i32) {
    %c0_i32 = arith.constant 0 : i32
    %c0_i32_0 = arith.constant 0 : i32
    %c0_i32_1 = arith.constant 0 : i32
    return %c0_i32, %c0_i32_0 : i32, i32
  }
  func.func @transform_7(%arg0: i32) -> (i32, i32, i32) {
    %c0_i32 = arith.constant 0 : i32
    %c0_i32_0 = arith.constant 0 : i32
    %c0_i32_1 = arith.constant 0 : i32
    return %arg0, %c0_i32, %c0_i32_0 : i32, i32, i32
  }
}

</mosaic_0001>

<llo_original>
// kernel: tpu_custom_call.1
$region0: #{tpu_custom_call.1}
  #allocation0 [shape = 'u32[]', space=smem, size = 0x4, offset = 0x4, fixed_abs, tag = 'smem constant byte address 0x4 - core index']
  #allocation1 [shape = 'u32[144,128]{1,0:T(1,128)}', space=vmem, size = 0x12000, scoped, tag = 'internal scratch']
  #allocation2 [shape = 'bf16[64,128]{1,0:T(16,128)(2,1)}', space=vmem, size = 0x4000, scoped, tag = 'scratch operand']
  #allocation3 [shape = 'bf16[64,128]{1,0:T(16,128)(2,1)}', space=vmem, size = 0x4000, scoped, tag = 'scratch operand']
  %s0 = inlined_call_operand.hbm [shape: f32[2,16,128], index: 0, kind: input, shape index: {}]
  %s1 = inlined_call_operand.hbm [shape: bf16[7,128,128], index: 1, kind: input, shape index: {}]
  %s2 = inlined_call_operand.vmem [shape: f32[1,128], index: 2, kind: input, shape index: {}]
  %s3 = inlined_call_operand.vmem [shape: f32[1,128], index: 3, kind: input, shape index: {}]
  %s4 = inlined_call_operand.hbm [shape: bf16[7,128,128], index: 4, kind: input, shape index: {}]
  %s5 = inlined_call_operand.vmem [shape: f32[1,128], index: 5, kind: input, shape index: {}]
  %s6 = inlined_call_operand.vmem [shape: f32[1,128], index: 6, kind: input, shape index: {}]
  %s7 = inlined_call_operand.hbm [shape: f32[2,16,128], index: 7, kind: output, shape index: {}]
  %s8 = sld [smem:[#allocation0]]
  $region73: #{tpu_custom_call.1} parent=0
    _
  %s10 = ssub.s32 1, %s8
  %s11 = scalar_select 0, %s10, %s8
  $region1: #{tpu_custom_call.1} parent=0
    #allocation4 [shape = 'u8[16384]{0}', space=vmem, size = 0x4000, scoped, tag = 'input window, operand 0']
    #allocation5 [shape = 's32[2]{0}', space=sflag, size = 0x8, scoped, tag = 'scoped memory for tpu_custom_call.1']
    #allocation6 [shape = 's32[2]{0}', space=sflag, size = 0x8, scoped, tag = 'scoped memory for tpu_custom_call.1']
    #allocation7 [shape = 'u8[229376]{0}', space=vmem, size = 0x38000, scoped, tag = 'input window, operand 1, single buffered']
    #allocation8 [shape = 's32[1]{0}', space=sflag, size = 0x4, scoped, tag = 'scoped memory for tpu_custom_call.1']
    #allocation9 [shape = 'u8[229376]{0}', space=vmem, size = 0x38000, scoped, tag = 'input window, operand 4, single buffered']
    #allocation10 [shape = 'u8[16384]{0}', space=vmem, size = 0x4000, scoped, tag = 'output window, operand 0']
    %12 = vsyncpa [#allocation5], 0
    %s13 = scalar_lea.sflag [#allocation5], 1
    %14 = vsyncpa %s13, 0
    %15 = vsyncpa [#allocation8], 0
    %16 = vsyncpa [#allocation6], 0
    %s17 = scalar_lea.sflag [#allocation6], 1
    %18 = vsyncpa %s17, 0
    loop: start=0, step=1, limit=4
    $region2: #{tpu_custom_call.1} parent=1 // loop_pre_header
      _
    $region3: #{tpu_custom_call.1} parent=1 // loop_header
      %s20 = sphi 0, %s24
      %p21 = scmp.ge.s32.totalorder %s20, 4
      %s30 = sphi 0, %s32
      %s33 = sphi 0, %s30
      %s34 = sphi 0, %s33
      %s50 = sphi 0, %s34
      %s54 = sphi 0, %s54
      %s56 = sphi 0, %s54
      %s57 = sphi 0, %s56
      %s71 = sphi 0, %s57
      %s75 = sphi 0, %s75
      %s77 = sphi 0, %s75
      %s78 = sphi 0, %s77
      %s92 = sphi 0, %s78
      %s96 = sphi 0, %s96
      %s98 = sphi 0, %s96
      %s99 = sphi 0, %s98
      %s113 = sphi 0, %s99
      %s117 = sphi 0, %s117
      %s119 = sphi 0, %s117
      %s120 = sphi 0, %s119
      %s134 = sphi 0, %s120
      %s138 = sphi 0, %s138
      %s140 = sphi 0, %s138
      %s141 = sphi 0, %s140
      %s155 = sphi 0, %s141
      %s159 = sphi 0, %s159
      %s161 = sphi 0, %s159
      %s162 = sphi 0, %s161
      %s176 = sphi 0, %s162
      %s182 = sphi 0, %s184
      %s185 = sphi 0, %s182
      %s186 = sphi 0, %s185
      %s202 = sphi 0, %s186
    $region4: #{tpu_custom_call.1} parent=1 // loop_header_branch
      %23 = sbr.rel (%p21) target = $region8
    $region5: #{tpu_custom_call.1} parent=1 // loop_body
      %s25 = ssub.s32 %s20, 1
      %s26 = ssub.s32 %s20, 2
      %s27 = sadd.s32 %s20, 1
      %s28 = ssub.s32 %s20, %s27
      %p29 = scmp.eq.s32.totalorder %s28, 0
      %s31 = sadd.s32 %s30, 1
      %s32 = scalar_select %p29, %s30, %s31
      %p35 = pneg %p29
      %p36 = scmp.eq.s32.totalorder %s20, 1
      %p37 = por %p35, %p36
      %p38 = scmp.ne.s32.totalorder %s30, %s33
      %p39 = scmp.eq.s32.totalorder %s20, 0
      %p40 = por %p38, %p39
      %p41 = scmp.ne.s32.totalorder %s30, %s33
      %p42 = scmp.eq.s32.totalorder %s25, 1
      %p43 = por %p41, %p42
      %p44 = scmp.ne.s32.totalorder %s33, %s34
      %p45 = scmp.eq.s32.totalorder %s25, 0
      %p46 = por %p44, %p45
      %p47 = scmp.ne.s32.totalorder %s33, %s34
      %p48 = scmp.eq.s32.totalorder %s26, 1
      %p49 = por %p47, %p48
      %p51 = scmp.ne.s32.totalorder %s34, %s50
      %p52 = scmp.eq.s32.totalorder %s26, 0
      %p53 = por %p51, %p52
      %s55 = sadd.s32 %s54, 1
      %p58 = scmp.eq.s32.totalorder %s20, 1
      %p59 = scmp.ne.s32.totalorder %s54, %s56
      %p60 = scmp.eq.s32.totalorder %s20, 0
      %p61 = por %p59, %p60
      %p62 = scmp.ne.s32.totalorder %s54, %s56
      %p63 = scmp.eq.s32.totalorder %s25, 1
      %p64 = por %p62, %p63
      %p65 = scmp.ne.s32.totalorder %s56, %s57
      %p66 = scmp.eq.s32.totalorder %s25, 0
      %p67 = por %p65, %p66
      %p68 = scmp.ne.s32.totalorder %s56, %s57
      %p69 = scmp.eq.s32.totalorder %s26, 1
      %p70 = por %p68, %p69
      %p72 = scmp.ne.s32.totalorder %s57, %s71
      %p73 = scmp.eq.s32.totalorder %s26, 0
      %p74 = por %p72, %p73
      %s76 = sadd.s32 %s75, 1
      %p79 = scmp.eq.s32.totalorder %s20, 1
      %p80 = scmp.ne.s32.totalorder %s75, %s77
      %p81 = scmp.eq.s32.totalorder %s20, 0
      %p82 = por %p80, %p81
      %p83 = scmp.ne.s32.totalorder %s75, %s77
      %p84 = scmp.eq.s32.totalorder %s25, 1
      %p85 = por %p83, %p84
      %p86 = scmp.ne.s32.totalorder %s77, %s78
      %p87 = scmp.eq.s32.totalorder %s25, 0
      %p88 = por %p86, %p87
      %p89 = scmp.ne.s32.totalorder %s77, %s78
      %p90 = scmp.eq.s32.totalorder %s26, 1
      %p91 = por %p89, %p90
      %p93 = scmp.ne.s32.totalorder %s78, %s92
      %p94 = scmp.eq.s32.totalorder %s26, 0
      %p95 = por %p93, %p94
      %s97 = sadd.s32 %s96, 1
      %p100 = scmp.eq.s32.totalorder %s20, 1
      %p101 = scmp.ne.s32.totalorder %s96, %s98
      %p102 = scmp.eq.s32.totalorder %s20, 0
      %p103 = por %p101, %p102
      %p104 = scmp.ne.s32.totalorder %s96, %s98
      %p105 = scmp.eq.s32.totalorder %s25, 1
      %p106 = por %p104, %p105
      %p107 = scmp.ne.s32.totalorder %s98, %s99
      %p108 = scmp.eq.s32.totalorder %s25, 0
      %p109 = por %p107, %p108
      %p110 = scmp.ne.s32.totalorder %s98, %s99
      %p111 = scmp.eq.s32.totalorder %s26, 1
      %p112 = por %p110, %p111
      %p114 = scmp.ne.s32.totalorder %s99, %s113
      %p115 = scmp.eq.s32.totalorder %s26, 0
      %p116 = por %p114, %p115
      %s118 = sadd.s32 %s117, 1
      %p121 = scmp.eq.s32.totalorder %s20, 1
      %p122 = scmp.ne.s32.totalorder %s117, %s119
      %p123 = scmp.eq.s32.totalorder %s20, 0
      %p124 = por %p122, %p123
      %p125 = scmp.ne.s32.totalorder %s117, %s119
      %p126 = scmp.eq.s32.totalorder %s25, 1
      %p127 = por %p125, %p126
      %p128 = scmp.ne.s32.totalorder %s119, %s120
      %p129 = scmp.eq.s32.totalorder %s25, 0
      %p130 = por %p128, %p129
      %p131 = scmp.ne.s32.totalorder %s119, %s120
      %p132 = scmp.eq.s32.totalorder %s26, 1
      %p133 = por %p131, %p132
      %p135 = scmp.ne.s32.totalorder %s120, %s134
      %p136 = scmp.eq.s32.totalorder %s26, 0
      %p137 = por %p135, %p136
      %s139 = sadd.s32 %s138, 1
      %p142 = scmp.eq.s32.totalorder %s20, 1
      %p143 = scmp.ne.s32.totalorder %s138, %s140
      %p144 = scmp.eq.s32.totalorder %s20, 0
      %p145 = por %p143, %p144
      %p146 = scmp.ne.s32.totalorder %s138, %s140
      %p147 = scmp.eq.s32.totalorder %s25, 1
      %p148 = por %p146, %p147
      %p149 = scmp.ne.s32.totalorder %s140, %s141
      %p150 = scmp.eq.s32.totalorder %s25, 0
      %p151 = por %p149, %p150
      %p152 = scmp.ne.s32.totalorder %s140, %s141
      %p153 = scmp.eq.s32.totalorder %s26, 1
      %p154 = por %p152, %p153
      %p156 = scmp.ne.s32.totalorder %s141, %s155
      %p157 = scmp.eq.s32.totalorder %s26, 0
      %p158 = por %p156, %p157
      %s160 = sadd.s32 %s159, 1
      %p163 = scmp.eq.s32.totalorder %s20, 1
      %p164 = scmp.ne.s32.totalorder %s159, %s161
      %p165 = scmp.eq.s32.totalorder %s20, 0
      %p166 = por %p164, %p165
      %p167 = scmp.ne.s32.totalorder %s159, %s161
      %p168 = scmp.eq.s32.totalorder %s25, 1
      %p169 = por %p167, %p168
      %p170 = scmp.ne.s32.totalorder %s161, %s162
      %p171 = scmp.eq.s32.totalorder %s25, 0
      %p172 = por %p170, %p171
      %p173 = scmp.ne.s32.totalorder %s161, %s162
      %p174 = scmp.eq.s32.totalorder %s26, 1
      %p175 = por %p173, %p174
      %p177 = scmp.ne.s32.totalorder %s162, %s176
      %p178 = scmp.eq.s32.totalorder %s26, 0
      %p179 = por %p177, %p178
      %s180 = ssub.s32 %s20, %s27
      %p181 = scmp.eq.s32.totalorder %s180, 0
      %s183 = sadd.s32 %s182, 1
      %s184 = scalar_select %p181, %s182, %s183
      %p187 = pneg %p181
      %p188 = scmp.eq.s32.totalorder %s20, 1
      %p189 = por %p187, %p188
      %p190 = scmp.ne.s32.totalorder %s182, %s185
      %p191 = scmp.eq.s32.totalorder %s20, 0
      %p192 = por %p190, %p191
      %p193 = scmp.ne.s32.totalorder %s182, %s185
      %p194 = scmp.eq.s32.totalorder %s25, 1
      %p195 = por %p193, %p194
      %p196 = scmp.ne.s32.totalorder %s185, %s186
      %p197 = scmp.eq.s32.totalorder %s25, 0
      %p198 = por %p196, %p197
      %p199 = scmp.ne.s32.totalorder %s185, %s186
      %p200 = scmp.eq.s32.totalorder %s26, 1
      %p201 = por %p199, %p200
      %p203 = scmp.ne.s32.totalorder %s186, %s202
      %p204 = scmp.eq.s32.totalorder %s26, 0
      %p205 = por %p203, %p204
      %p206 = scmp.le.s32.totalorder 1, %s20
      %p207 = scmp.lt.s32.totalorder %s20, 3
      %p208 = pnand %p206, %p207
      %p209 = pneg %p208
      // Predicated region
      $region9: #{tpu_custom_call.1} parent=5 // pred_check
        _
      $region10: #{tpu_custom_call.1} parent=5 // pred_check_branch
        %211 = sbr.rel (%p208) target = $region12
      $region11: #{tpu_custom_call.1} parent=5 // pred_region
        %s212 = ssub.s32 %s20, 1
        // Predicated region
        $region13: #{tpu_custom_call.1} parent=11 // pred_check
          %p213 = pneg %p67
        $region14: #{tpu_custom_call.1} parent=11 // pred_check_branch
          %215 = sbr.rel (%p213) target = $region16
        $region15: #{tpu_custom_call.1} parent=11 // pred_region
          %s217 = ssub.s32 7168, 7168
          %218 = vsyncadd [#allocation8], %s217
          %s219 = sshll.u32 [#allocation7], 4
          %s220 = int_to_ptr.vmem [resolvable:$true] %s219
          %225 = dma.hbm_to_vmem [thread:$0]  %s1, 7168, %s220, [#allocation8], 64, 64, 4
        $region16: #{tpu_custom_call.1} parent=11 // pred_fallthru
          _
        // Predicated region
        $region17: #{tpu_custom_call.1} parent=11 // pred_check
          %p226 = pneg %p88
        $region18: #{tpu_custom_call.1} parent=11 // pred_check_branch
          %228 = sbr.rel (%p226) target = $region20
        $region19: #{tpu_custom_call.1} parent=11 // pred_region
          _
        $region20: #{tpu_custom_call.1} parent=11 // pred_fallthru
          _
        // Predicated region
        $region21: #{tpu_custom_call.1} parent=11 // pred_check
          %p229 = pneg %p109
        $region22: #{tpu_custom_call.1} parent=11 // pred_check_branch
          %231 = sbr.rel (%p229) target = $region24
        $region23: #{tpu_custom_call.1} parent=11 // pred_region
          _
        $region24: #{tpu_custom_call.1} parent=11 // pred_fallthru
          _
        // Predicated region
        $region25: #{tpu_custom_call.1} parent=11 // pred_check
          %p232 = pneg %p130
        $region26: #{tpu_custom_call.1} parent=11 // pred_check_branch
          %234 = sbr.rel (%p232) target = $region28
        $region27: #{tpu_custom_call.1} parent=11 // pred_region
          %s236 = ssub.s32 7168, 7168
          %237 = vsyncadd [#allocation8], %s236
          %s238 = sshll.u32 [#allocation9], 4
          %s239 = int_to_ptr.vmem [resolvable:$true] %s238
          %244 = dma.hbm_to_vmem [thread:$0]  %s4, 7168, %s239, [#allocation8], 64, 64, 4
        $region28: #{tpu_custom_call.1} parent=11 // pred_fallthru
          _
        // Predicated region
        $region29: #{tpu_custom_call.1} parent=11 // pred_check
          %p245 = pneg %p151
        $region30: #{tpu_custom_call.1} parent=11 // pred_check_branch
          %247 = sbr.rel (%p245) target = $region32
        $region31: #{tpu_custom_call.1} parent=11 // pred_region
          _
        $region32: #{tpu_custom_call.1} parent=11 // pred_fallthru
          _
        // Predicated region
        $region33: #{tpu_custom_call.1} parent=11 // pred_check
          %p248 = pneg %p172
        $region34: #{tpu_custom_call.1} parent=11 // pred_check_branch
          %250 = sbr.rel (%p248) target = $region36
        $region35: #{tpu_custom_call.1} parent=11 // pred_region
          _
        $region36: #{tpu_custom_call.1} parent=11 // pred_fallthru
          _
      $region12: #{tpu_custom_call.1} parent=5 // pred_fallthru
        _
      %p251 = scmp.lt.s32.totalorder %s20, 2
      // Predicated region
      $region37: #{tpu_custom_call.1} parent=5 // pred_check
        %p252 = pneg %p251
      $region38: #{tpu_custom_call.1} parent=5 // pred_check_branch
        %254 = sbr.rel (%p252) target = $region40
      $region39: #{tpu_custom_call.1} parent=5 // pred_region
        // Predicated region
        $region41: #{tpu_custom_call.1} parent=39 // pred_check
          %p255 = pneg %p40
        $region42: #{tpu_custom_call.1} parent=39 // pred_check_branch
          %257 = sbr.rel (%p255) target = $region44
        $region43: #{tpu_custom_call.1} parent=39 // pred_region
          %s258 = sand.u32 %s30, 1
          %s259 = scalar_lea.sflag [#allocation5], %s258
          %s260 = sand.u32 %s30, 1
          %s261 = smul.addr %s260, 16
          %s262 = scalar_lea.vmem [#allocation4], %s261
          %s264 = ssub.s32 256, 256
          %265 = vsyncadd %s259, %s264
          %s266 = smul.addr %s20, 2
          %s267 = smul.addr %s266, 128
          %s268 = scalar_lea.hbm %s0, %s267
          %s269 = sshll.u32 %s262, 4
          %s270 = int_to_ptr.vmem [resolvable:$true] %s269
          %275 = dma.hbm_to_vmem [thread:$0]  %s268, 256, %s270, %s259, 128, 128, 8
        $region44: #{tpu_custom_call.1} parent=39 // pred_fallthru
          _
      $region40: #{tpu_custom_call.1} parent=5 // pred_fallthru
        _
      %p276 = scmp.le.s32.totalorder 1, %s20
      %p277 = scmp.lt.s32.totalorder %s20, 3
      %p278 = pnand %p276, %p277
      %p279 = pneg %p278
      // Predicated region
      $region45: #{tpu_custom_call.1} parent=5 // pred_check
        _
      $region46: #{tpu_custom_call.1} parent=5 // pred_check_branch
        %281 = sbr.rel (%p278) target = $region48
      $region47: #{tpu_custom_call.1} parent=5 // pred_region
        %s282 = ssub.s32 %s20, 1
        %s283 = sand.u32 %s33, 1
        %s284 = scalar_lea.sflag [#allocation5], %s283
        %s285 = sand.u32 %s33, 1
        %s286 = smul.addr %s285, 16
        %s287 = scalar_lea.vmem [#allocation4], %s286
        // Predicated region
        $region49: #{tpu_custom_call.1} parent=47 // pred_check
          %p288 = pneg %p46
        $region50: #{tpu_custom_call.1} parent=47 // pred_check_branch
          %290 = sbr.rel (%p288) target = $region52
        $region51: #{tpu_custom_call.1} parent=47 // pred_region
          %291 = dma.done %s284, 256
        $region52: #{tpu_custom_call.1} parent=47 // pred_fallthru
          _
        // Predicated region
        $region53: #{tpu_custom_call.1} parent=47 // pred_check
          %p292 = pneg %p67
        $region54: #{tpu_custom_call.1} parent=47 // pred_check_branch
          %294 = sbr.rel (%p292) target = $region56
        $region55: #{tpu_custom_call.1} parent=47 // pred_region
          %295 = dma.done [#allocation8], 7168
        $region56: #{tpu_custom_call.1} parent=47 // pred_fallthru
          _
        // Predicated region
        $region57: #{tpu_custom_call.1} parent=47 // pred_check
          %p296 = pneg %p130
        $region58: #{tpu_custom_call.1} parent=47 // pred_check_branch
          %298 = sbr.rel (%p296) target = $region60
        $region59: #{tpu_custom_call.1} parent=47 // pred_region
          %299 = dma.done [#allocation8], 7168
        $region60: #{tpu_custom_call.1} parent=47 // pred_fallthru
          _
        %s300 = sand.u32 %s33, 1
        %s301 = scalar_lea.sflag [#allocation5], %s300
        %s302 = sand.u32 %s33, 1
        %s303 = smul.addr %s302, 16
        %s304 = scalar_lea.vmem [#allocation4], %s303
        %p305 = pneg %p46
        %p306 = pneg %p43
        %p307 = pneg %p67
        %p308 = pneg %p64
        %p309 = pneg %p88
        %p310 = pneg %p85
        %p311 = pneg %p109
        %p312 = pneg %p106
        %p313 = pneg %p130
        %p314 = pneg %p127
        %p315 = pneg %p151
        %p316 = pneg %p148
        %p317 = pneg %p172
        %p318 = pneg %p169
        %p319 = pneg %p198
        %p320 = pneg %p195
        %s321 = sand.u32 %s185, 1
        %s322 = scalar_lea.sflag [#allocation6], %s321
        %s323 = sand.u32 %s185, 1
        %s324 = smul.addr %s323, 16
        %s325 = scalar_lea.vmem [#allocation10], %s324
        %327 = vst [vmem:[#allocation2] sm:$0xff] 0
        %328 = vst [vmem:[#allocation3] sm:$0xff] 0
        %329 = vst [vmem:[#allocation2 + $0x18] sm:$0xff] 0
        %330 = vst [vmem:[#allocation3 + $0x18] sm:$0xff] 0
        %331 = vst [vmem:[#allocation2 + $0x10] sm:$0xff] 0
        %332 = vst [vmem:[#allocation3 + $0x10] sm:$0xff] 0
        %v333 = vld [vmem:[%s287] sm:$0xff]
        %v334 = vld [vmem:[%s287 + $0x8] sm:$0xff]
        %v335 = vpack.c.bf16 %v334, %v333
        %336 = vst [vmem:[#allocation2 + $0x8] sm:$0xff] %v335
        %v337 = vld [vmem:[%s2] sm:$0x1]
        %v338 = vld [vmem:[%s3] sm:$0x1]
        %v339 = vld [vmem:[%s5] sm:$0x1]
        %v340 = vld [vmem:[%s6] sm:$0x1]
        %v341 = vld [vmem:[#allocation2] sm:$0xc0]
        %v342 = vld [vmem:[#allocation2 + $0x8] sm:$0xff]
        %v343 = vld [vmem:[#allocation2 + $0x10] sm:$0x7f]
        %v344 = vld [vmem:[#allocation7] sm:$0xf]
        %v345 = vld [vmem:[#allocation7 + $0x4] sm:$0xf]
        %v346 = vld [vmem:[#allocation7 + $0x8] sm:$0xf]
        %v347 = vld [vmem:[#allocation7 + $0xc] sm:$0xf]
        %v348 = vld [vmem:[#allocation7 + $0x10] sm:$0xf]
        %v349 = vld [vmem:[#allocation7 + $0x14] sm:$0xf]
        %v350 = vld [vmem:[#allocation7 + $0x18] sm:$0xf]
        %v351 = vld [vmem:[#allocation7 + $0x1c] sm:$0xf]
        %v352 = vld [vmem:[#allocation7 + $0x20] sm:$0xf]
        %v353 = vld [vmem:[#allocation7 + $0x24] sm:$0xf]
        %v354 = vld [vmem:[#allocation7 + $0x28] sm:$0xf]
        %v355 = vld [vmem:[#allocation7 + $0x2c] sm:$0xf]
        %v356 = vld [vmem:[#allocation7 + $0x30] sm:$0xf]
        %v357 = vld [vmem:[#allocation7 + $0x34] sm:$0xf]
        %v358 = vld [vmem:[#allocation7 + $0x38] sm:$0xf]
        %v359 = vld [vmem:[#allocation7 + $0x3c] sm:$0xf]
        %v360 = vld [vmem:[#allocation2] sm:$0x80]
        %s361 = scalar_lea.vmem [#allocation7], 64
        %v362 = vld [vmem:[%s361] sm:$0xf]
        %v363 = vld [vmem:[%s361 + $0x4] sm:$0xf]
        %v364 = vld [vmem:[%s361 + $0x8] sm:$0xf]
        %v365 = vld [vmem:[%s361 + $0xc] sm:$0xf]
        %v366 = vld [vmem:[%s361 + $0x10] sm:$0xf]
        %v367 = vld [vmem:[%s361 + $0x14] sm:$0xf]
        %v368 = vld [vmem:[%s361 + $0x18] sm:$0xf]
        %v369 = vld [vmem:[%s361 + $0x1c] sm:$0xf]
        %v370 = vld [vmem:[%s361 + $0x20] sm:$0xf]
        %v371 = vld [vmem:[%s361 + $0x24] sm:$0xf]
        %v372 = vld [vmem:[%s361 + $0x28] sm:$0xf]
        %v373 = vld [vmem:[%s361 + $0x2c] sm:$0xf]
        %v374 = vld [vmem:[%s361 + $0x30] sm:$0xf]
        %v375 = vld [vmem:[%s361 + $0x34] sm:$0xf]
        %v376 = vld [vmem:[%s361 + $0x38] sm:$0xf]
        %v377 = vld [vmem:[%s361 + $0x3c] sm:$0xf]
        %vm381 = vcmask 1040384
        %v382 = vrot.slane %v360, 7
        %v383 = vrot.slane %v342, 7
        %v384 = vsel %vm381, %v382, %v383
        %v385 = vrot.slane %v343, 7
        %v386 = vsel %vm381, %v383, %v385
        %v405 = vunpack.c.l.b16 %v362
        %v406 = vunpack.c.l.b16 %v363
        %v407 = vunpack.c.l.b16 %v364
        %v408 = vunpack.c.l.b16 %v365
        %v409 = vunpack.c.l.b16 %v366
        %v410 = vunpack.c.l.b16 %v367
        %v411 = vunpack.c.l.b16 %v368
        %v412 = vunpack.c.l.b16 %v369
        %v413 = vunpack.c.l.b16 %v370
        %v414 = vunpack.c.l.b16 %v371
        %v415 = vunpack.c.l.b16 %v372
        %v416 = vunpack.c.l.b16 %v373
        %v417 = vunpack.c.l.b16 %v374
        %v418 = vunpack.c.l.b16 %v375
        %v419 = vunpack.c.l.b16 %v376
        %v420 = vunpack.c.l.b16 %v377
        %v421 = vpack.c.b16 %v406, %v405
        %v422 = vpack.c.b16 %v408, %v407
        %v423 = vpack.c.b16 %v410, %v409
        %v424 = vpack.c.b16 %v412, %v411
        %v425 = vpack.c.b16 %v414, %v413
        %v426 = vpack.c.b16 %v416, %v415
        %v427 = vpack.c.b16 %v418, %v417
        %v428 = vpack.c.b16 %v420, %v419
        %437 = vmatprep.subr.bf16.mxu0 0
        %438 = vmatpush1.bf16.msra.mxu0 %v421
        %439 = vmatprep.subr.bf16.mxu0 0
        %440 = vmatpush1.bf16.msra.mxu0 %v422
        %441 = vmatprep.subr.bf16.mxu0 0
        %442 = vmatpush1.bf16.msra.mxu0 %v423
        %443 = vmatprep.subr.bf16.mxu0 0
        %444 = vmatpush1.bf16.msra.mxu0 %v424
        %445 = vmatprep.subr.bf16.mxu0 0
        %446 = vmatpush1.bf16.msra.mxu0 %v425
        %447 = vmatprep.subr.bf16.mxu0 0
        %448 = vmatpush1.bf16.msra.mxu0 %v426
        %449 = vmatprep.subr.bf16.mxu0 0
        %450 = vmatpush1.bf16.msra.mxu0 %v427
        %451 = vmatprep.subr.bf16.mxu0 0
        %452 = vmatpush1.bf16.msra.mxu0 %v428
        %453 = vmatprep.subr.bf16.mxu0 0
        %454 = vmatpush1.bf16.msra.mxu0 0
        %455 = vmatprep.subr.bf16.mxu0 0
        %456 = vmatpush1.bf16.msra.mxu0 0
        %457 = vmatprep.subr.bf16.mxu0 0
        %458 = vmatpush1.bf16.msra.mxu0 0
        %459 = vmatprep.subr.bf16.mxu0 0
        %460 = vmatpush1.bf16.msra.mxu0 0
        %461 = vmatprep.subr.bf16.mxu0 0
        %462 = vmatpush1.bf16.msra.mxu0 0
        %463 = vmatprep.subr.bf16.mxu0 0
        %464 = vmatpush1.bf16.msra.mxu0 0
        %465 = vmatprep.subr.bf16.mxu0 0
        %466 = vmatpush1.bf16.msra.mxu0 0
        %467 = vmatprep.subr.bf16.mxu0 0
        %468 = vmatpush1.bf16.msra.mxu0 0
        %469 = vmatprep.mubr.bf16.mxu0 0
        %470 = vmatmul.mubr.bf16.gmra.mrb[0].mxu0 %v384
        %v471 = vpop.f32.mrb[0].mxu0
        %v472 = vadd.f32 0.0, %v471
        %v473 = vpop.f32.mrb[0].mxu0
        %v474 = vpop.f32.mrb[0].mxu0
        %v475 = vadd.f32 0.0, %v474
        %v476 = vpop.f32.mrb[0].mxu0
        %477 = vmatprep.mubr.bf16.mxu0 0
        %478 = vmatmul.mubr.bf16.gmra.mrb[0].mxu0 %v386
        %v479 = vpop.f32.mrb[0].mxu0
        %v480 = vpop.f32.mrb[0].mxu0
        %v481 = vpop.f32.mrb[0].mxu0
        %v482 = vpop.f32.mrb[0].mxu0
        %483 = vdwg.mxu0
        %vm484 = vsmask.f32 1280
        %v486 = vshrl.u32 %v341, 16
        %v488 = vrot.slane %v486, 6
        %v489 = vshll.u32 %v341, 16
        %v491 = vrot.slane %v489, 7
        %v492 = vor.u32 %v488, %v491
        %v494 = vshrl.u32 %v342, 16
        %v496 = vrot.slane %v494, 6
        %v497 = vshll.u32 %v342, 16
        %v499 = vrot.slane %v497, 7
        %v500 = vor.u32 %v496, %v499
        %v501 = vsel %vm484, %v492, %v500
        %v503 = vshrl.u32 %v343, 16
        %v505 = vrot.slane %v503, 6
        %v506 = vshll.u32 %v343, 16
        %v508 = vrot.slane %v506, 7
        %v509 = vor.u32 %v505, %v508
        %v510 = vsel %vm484, %v500, %v509
        %v529 = vunpack.c.l.b16 %v344
        %v530 = vunpack.c.l.b16 %v345
        %v531 = vunpack.c.l.b16 %v346
        %v532 = vunpack.c.l.b16 %v347
        %v533 = vunpack.c.l.b16 %v348
        %v534 = vunpack.c.l.b16 %v349
        %v535 = vunpack.c.l.b16 %v350
        %v536 = vunpack.c.l.b16 %v351
        %v537 = vunpack.c.l.b16 %v352
        %v538 = vunpack.c.l.b16 %v353
        %v539 = vunpack.c.l.b16 %v354
        %v540 = vunpack.c.l.b16 %v355
        %v541 = vunpack.c.l.b16 %v356
        %v542 = vunpack.c.l.b16 %v357
        %v543 = vunpack.c.l.b16 %v358
        %v544 = vunpack.c.l.b16 %v359
        %v545 = vpack.c.b16 %v530, %v529
        %v546 = vpack.c.b16 %v532, %v531
        %v547 = vpack.c.b16 %v534, %v533
        %v548 = vpack.c.b16 %v536, %v535
        %v549 = vpack.c.b16 %v538, %v537
        %v550 = vpack.c.b16 %v540, %v539
        %v551 = vpack.c.b16 %v542, %v541
        %v552 = vpack.c.b16 %v544, %v543
        %561 = vmatprep.subr.bf16.mxu0 0
        %562 = vmatpush1.bf16.msra.mxu0 %v545
        %563 = vmatprep.subr.bf16.mxu0 0
        %564 = vmatpush1.bf16.msra.mxu0 %v546
        %565 = vmatprep.subr.bf16.mxu0 0
        %566 = vmatpush1.bf16.msra.mxu0 %v547
        %567 = vmatprep.subr.bf16.mxu0 0
        %568 = vmatpush1.bf16.msra.mxu0 %v548
        %569 = vmatprep.subr.bf16.mxu0 0
        %570 = vmatpush1.bf16.msra.mxu0 %v549
        %571 = vmatprep.subr.bf16.mxu0 0
        %572 = vmatpush1.bf16.msra.mxu0 %v550
        %573 = vmatprep.subr.bf16.mxu0 0
        %574 = vmatpush1.bf16.msra.mxu0 %v551
        %575 = vmatprep.subr.bf16.mxu0 0
        %576 = vmatpush1.bf16.msra.mxu0 %v552
        %577 = vmatprep.subr.bf16.mxu0 0
        %578 = vmatpush1.bf16.msra.mxu0 0
        %579 = vmatprep.subr.bf16.mxu0 0
        %580 = vmatpush1.bf16.msra.mxu0 0
        %581 = vmatprep.subr.bf16.mxu0 0
        %582 = vmatpush1.bf16.msra.mxu0 0
        %583 = vmatprep.subr.bf16.mxu0 0
        %584 = vmatpush1.bf16.msra.mxu0 0
        %585 = vmatprep.subr.bf16.mxu0 0
        %586 = vmatpush1.bf16.msra.mxu0 0
        %587 = vmatprep.subr.bf16.mxu0 0
        %588 = vmatpush1.bf16.msra.mxu0 0
        %589 = vmatprep.subr.bf16.mxu0 0
        %590 = vmatpush1.bf16.msra.mxu0 0
        %591 = vmatprep.subr.bf16.mxu0 0
        %592 = vmatpush1.bf16.msra.mxu0 0
        %593 = vmatprep.mubr.bf16.mxu0 0
        %594 = vmatmul.mubr.bf16.gmra.mrb[0].mxu0 %v501
        %v595 = vpop.f32.mrb[0].mxu0
        %v596 = vadd.f32 %v472, %v595
        %v597 = vpop.f32.mrb[0].mxu0
        %v598 = vpop.f32.mrb[0].mxu0
        %v599 = vadd.f32 %v475, %v598
        %v600 = vpop.f32.mrb[0].mxu0
        %601 = vmatprep.mubr.bf16.mxu0 0
        %602 = vmatmul.mubr.bf16.gmra.mrb[0].mxu0 %v510
        %v603 = vpop.f32.mrb[0].mxu0
        %v604 = vpop.f32.mrb[0].mxu0
        %v605 = vpop.f32.mrb[0].mxu0
        %v606 = vpop.f32.mrb[0].mxu0
        %607 = vdwg.mxu0
        %v608 = vld [vmem:[#allocation2 + $0x10] sm:$0xff]
        %s609 = scalar_lea.vmem [#allocation7], 128
        %v610 = vld [vmem:[%s609] sm:$0xf]
        %v611 = vld [vmem:[%s609 + $0x4] sm:$0xf]
        %v612 = vld [vmem:[%s609 + $0x8] sm:$0xf]
        %v613 = vld [vmem:[%s609 + $0xc] sm:$0xf]
        %v614 = vld [vmem:[%s609 + $0x10] sm:$0xf]
        %v615 = vld [vmem:[%s609 + $0x14] sm:$0xf]
        %v616 = vld [vmem:[%s609 + $0x18] sm:$0xf]
        %v617 = vld [vmem:[%s609 + $0x1c] sm:$0xf]
        %v618 = vld [vmem:[%s609 + $0x20] sm:$0xf]
        %v619 = vld [vmem:[%s609 + $0x24] sm:$0xf]
        %v620 = vld [vmem:[%s609 + $0x28] sm:$0xf]
        %v621 = vld [vmem:[%s609 + $0x2c] sm:$0xf]
        %v622 = vld [vmem:[%s609 + $0x30] sm:$0xf]
        %v623 = vld [vmem:[%s609 + $0x34] sm:$0xf]
        %v624 = vld [vmem:[%s609 + $0x38] sm:$0xf]
        %v625 = vld [vmem:[%s609 + $0x3c] sm:$0xf]
        %vm626 = vsmask.f32 256
        %v628 = vshrl.u32 %v360, 16
        %v630 = vrot.slane %v628, 7
        %v631 = vrot.slane %v494, 7
        %v632 = vor.u32 %v631, %v497
        %v633 = vsel %vm626, %v630, %v632
        %v635 = vshrl.u32 %v608, 16
        %v637 = vrot.slane %v635, 7
        %v638 = vshll.u32 %v608, 16
        %v640 = vor.u32 %v637, %v638
        %v641 = vsel %vm626, %v631, %v640
        %v660 = vunpack.c.l.b16 %v610
        %v661 = vunpack.c.l.b16 %v611
        %v662 = vunpack.c.l.b16 %v612
        %v663 = vunpack.c.l.b16 %v613
        %v664 = vunpack.c.l.b16 %v614
        %v665 = vunpack.c.l.b16 %v615
        %v666 = vunpack.c.l.b16 %v616
        %v667 = vunpack.c.l.b16 %v617
        %v668 = vunpack.c.l.b16 %v618
        %v669 = vunpack.c.l.b16 %v619
        %v670 = vunpack.c.l.b16 %v620
        %v671 = vunpack.c.l.b16 %v621
        %v672 = vunpack.c.l.b16 %v622
        %v673 = vunpack.c.l.b16 %v623
        %v674 = vunpack.c.l.b16 %v624
        %v675 = vunpack.c.l.b16 %v625
        %v676 = vpack.c.b16 %v661, %v660
        %v677 = vpack.c.b16 %v663, %v662
        %v678 = vpack.c.b16 %v665, %v664
        %v679 = vpack.c.b16 %v667, %v666
        %v680 = vpack.c.b16 %v669, %v668
        %v681 = vpack.c.b16 %v671, %v670
        %v682 = vpack.c.b16 %v673, %v672
        %v683 = vpack.c.b16 %v675, %v674
        %692 = vmatprep.subr.bf16.mxu0 0
        %693 = vmatpush1.bf16.msra.mxu0 %v676
        %694 = vmatprep.subr.bf16.mxu0 0
        %695 = vmatpush1.bf16.msra.mxu0 %v677
        %696 = vmatprep.subr.bf16.mxu0 0
        %697 = vmatpush1.bf16.msra.mxu0 %v678
        %698 = vmatprep.subr.bf16.mxu0 0
        %699 = vmatpush1.bf16.msra.mxu0 %v679
        %700 = vmatprep.subr.bf16.mxu0 0
        %701 = vmatpush1.bf16.msra.mxu0 %v680
        %702 = vmatprep.subr.bf16.mxu0 0
        %703 = vmatpush1.bf16.msra.mxu0 %v681
        %704 = vmatprep.subr.bf16.mxu0 0
        %705 = vmatpush1.bf16.msra.mxu0 %v682
        %706 = vmatprep.subr.bf16.mxu0 0
        %707 = vmatpush1.bf16.msra.mxu0 %v683
        %708 = vmatprep.subr.bf16.mxu0 0
        %709 = vmatpush1.bf16.msra.mxu0 0
        %710 = vmatprep.subr.bf16.mxu0 0
        %711 = vmatpush1.bf16.msra.mxu0 0
        %712 = vmatprep.subr.bf16.mxu0 0
        %713 = vmatpush1.bf16.msra.mxu0 0
        %714 = vmatprep.subr.bf16.mxu0 0
        %715 = vmatpush1.bf16.msra.mxu0 0
        %716 = vmatprep.subr.bf16.mxu0 0
        %717 = vmatpush1.bf16.msra.mxu0 0
        %718 = vmatprep.subr.bf16.mxu0 0
        %719 = vmatpush1.bf16.msra.mxu0 0
        %720 = vmatprep.subr.bf16.mxu0 0
        %721 = vmatpush1.bf16.msra.mxu0 0
        %722 = vmatprep.subr.bf16.mxu0 0
        %723 = vmatpush1.bf16.msra.mxu0 0
        %724 = vmatprep.mubr.bf16.mxu0 0
        %725 = vmatmul.mubr.bf16.gmra.mrb[0].mxu0 %v633
        %v726 = vpop.f32.mrb[0].mxu0
        %v727 = vadd.f32 0.0, %v726
        %v728 = vpop.f32.mrb[0].mxu0
        %v729 = vpop.f32.mrb[0].mxu0
        %v730 = vadd.f32 0.0, %v729
        %v731 = vpop.f32.mrb[0].mxu0
        %732 = vmatprep.mubr.bf16.mxu0 0
        %733 = vmatmul.mubr.bf16.gmra.mrb[0].mxu0 %v641
        %v734 = vpop.f32.mrb[0].mxu0
        %v735 = vpop.f32.mrb[0].mxu0
        %v736 = vpop.f32.mrb[0].mxu0
        %v737 = vpop.f32.mrb[0].mxu0
        %738 = vdwg.mxu0
        %v739 = vadd.f32 %v596, %v727
        %v740 = vadd.f32 %v599, %v730
        %s741 = scalar_lea.vmem [#allocation7], 192
        %v742 = vld [vmem:[%s741] sm:$0xf]
        %v743 = vld [vmem:[%s741 + $0x4] sm:$0xf]
        %v744 = vld [vmem:[%s741 + $0x8] sm:$0xf]
        %v745 = vld [vmem:[%s741 + $0xc] sm:$0xf]
        %v746 = vld [vmem:[%s741 + $0x10] sm:$0xf]
        %v747 = vld [vmem:[%s741 + $0x14] sm:$0xf]
        %v748 = vld [vmem:[%s741 + $0x18] sm:$0xf]
        %v749 = vld [vmem:[%s741 + $0x1c] sm:$0xf]
        %v750 = vld [vmem:[%s741 + $0x20] sm:$0xf]
        %v751 = vld [vmem:[%s741 + $0x24] sm:$0xf]
        %v752 = vld [vmem:[%s741 + $0x28] sm:$0xf]
        %v753 = vld [vmem:[%s741 + $0x2c] sm:$0xf]
        %v754 = vld [vmem:[%s741 + $0x30] sm:$0xf]
        %v755 = vld [vmem:[%s741 + $0x34] sm:$0xf]
        %v756 = vld [vmem:[%s741 + $0x38] sm:$0xf]
        %v757 = vld [vmem:[%s741 + $0x3c] sm:$0xf]
        %v774 = vunpack.c.l.b16 %v742
        %v775 = vunpack.c.l.b16 %v743
        %v776 = vunpack.c.l.b16 %v744
        %v777 = vunpack.c.l.b16 %v745
        %v778 = vunpack.c.l.b16 %v746
        %v779 = vunpack.c.l.b16 %v747
        %v780 = vunpack.c.l.b16 %v748
        %v781 = vunpack.c.l.b16 %v749
        %v782 = vunpack.c.l.b16 %v750
        %v783 = vunpack.c.l.b16 %v751
        %v784 = vunpack.c.l.b16 %v752
        %v785 = vunpack.c.l.b16 %v753
        %v786 = vunpack.c.l.b16 %v754
        %v787 = vunpack.c.l.b16 %v755
        %v788 = vunpack.c.l.b16 %v756
        %v789 = vunpack.c.l.b16 %v757
        %v790 = vpack.c.b16 %v775, %v774
        %v791 = vpack.c.b16 %v777, %v776
        %v792 = vpack.c.b16 %v779, %v778
        %v793 = vpack.c.b16 %v781, %v780
        %v794 = vpack.c.b16 %v783, %v782
        %v795 = vpack.c.b16 %v785, %v784
        %v796 = vpack.c.b16 %v787, %v786
        %v797 = vpack.c.b16 %v789, %v788
        %806 = vmatprep.subr.bf16.mxu0 0
        %807 = vmatpush1.bf16.msra.mxu0 %v790
        %808 = vmatprep.subr.bf16.mxu0 0
        %809 = vmatpush1.bf16.msra.mxu0 %v791
        %810 = vmatprep.subr.bf16.mxu0 0
        %811 = vmatpush1.bf16.msra.mxu0 %v792
        %812 = vmatprep.subr.bf16.mxu0 0
        %813 = vmatpush1.bf16.msra.mxu0 %v793
        %814 = vmatprep.subr.bf16.mxu0 0
        %815 = vmatpush1.bf16.msra.mxu0 %v794
        %816 = vmatprep.subr.bf16.mxu0 0
        %817 = vmatpush1.bf16.msra.mxu0 %v795
        %818 = vmatprep.subr.bf16.mxu0 0
        %819 = vmatpush1.bf16.msra.mxu0 %v796
        %820 = vmatprep.subr.bf16.mxu0 0
        %821 = vmatpush1.bf16.msra.mxu0 %v797
        %822 = vmatprep.subr.bf16.mxu0 0
        %823 = vmatpush1.bf16.msra.mxu0 0
        %824 = vmatprep.subr.bf16.mxu0 0
        %825 = vmatpush1.bf16.msra.mxu0 0
        %826 = vmatprep.subr.bf16.mxu0 0
        %827 = vmatpush1.bf16.msra.mxu0 0
        %828 = vmatprep.subr.bf16.mxu0 0
        %829 = vmatpush1.bf16.msra.mxu0 0
        %830 = vmatprep.subr.bf16.mxu0 0
        %831 = vmatpush1.bf16.msra.mxu0 0
        %832 = vmatprep.subr.bf16.mxu0 0
        %833 = vmatpush1.bf16.msra.mxu0 0
        %834 = vmatprep.subr.bf16.mxu0 0
        %835 = vmatpush1.bf16.msra.mxu0 0
        %836 = vmatprep.subr.bf16.mxu0 0
        %837 = vmatpush1.bf16.msra.mxu0 0
        %838 = vmatprep.mubr.bf16.mxu0 0
        %839 = vmatmul.mubr.bf16.gmra.mrb[0].mxu0 %v342
        %v840 = vpop.f32.mrb[0].mxu0
        %v841 = vadd.f32 0.0, %v840
        %v842 = vpop.f32.mrb[0].mxu0
        %v843 = vpop.f32.mrb[0].mxu0
        %v844 = vadd.f32 0.0, %v843
        %v845 = vpop.f32.mrb[0].mxu0
        %846 = vmatprep.mubr.bf16.mxu0 0
        %847 = vmatmul.mubr.bf16.gmra.mrb[0].mxu0 %v608
        %v848 = vpop.f32.mrb[0].mxu0
        %v849 = vpop.f32.mrb[0].mxu0
        %v850 = vpop.f32.mrb[0].mxu0
        %v851 = vpop.f32.mrb[0].mxu0
        %852 = vdwg.mxu0
        %v853 = vadd.f32 %v739, %v841
        %v854 = vadd.f32 %v740, %v844
        %v855 = vld [vmem:[#allocation2 + $0x8] sm:$0xff]
        %v856 = vld [vmem:[#allocation2 + $0x10] sm:$0xff]
        %v857 = vld [vmem:[#allocation2 + $0x18] sm:$0x1]
        %s858 = scalar_lea.vmem [#allocation7], 256
        %v859 = vld [vmem:[%s858] sm:$0xf]
        %v860 = vld [vmem:[%s858 + $0x4] sm:$0xf]
        %v861 = vld [vmem:[%s858 + $0x8] sm:$0xf]
        %v862 = vld [vmem:[%s858 + $0xc] sm:$0xf]
        %v863 = vld [vmem:[%s858 + $0x10] sm:$0xf]
        %v864 = vld [vmem:[%s858 + $0x14] sm:$0xf]
        %v865 = vld [vmem:[%s858 + $0x18] sm:$0xf]
        %v866 = vld [vmem:[%s858 + $0x1c] sm:$0xf]
        %v867 = vld [vmem:[%s858 + $0x20] sm:$0xf]
        %v868 = vld [vmem:[%s858 + $0x24] sm:$0xf]
        %v869 = vld [vmem:[%s858 + $0x28] sm:$0xf]
        %v870 = vld [vmem:[%s858 + $0x2c] sm:$0xf]
        %v871 = vld [vmem:[%s858 + $0x30] sm:$0xf]
        %v872 = vld [vmem:[%s858 + $0x34] sm:$0xf]
        %v873 = vld [vmem:[%s858 + $0x38] sm:$0xf]
        %v874 = vld [vmem:[%s858 + $0x3c] sm:$0xf]
        %vm875 = vsmask.f32 7424
        %v877 = vshrl.u32 %v855, 16
        %v879 = vshll.u32 %v855, 16
        %v881 = vrot.slane %v879, 1
        %v882 = vor.u32 %v877, %v881
        %v884 = vshll.u32 %v856, 16
        %v886 = vrot.slane %v884, 1
        %v887 = vsel %vm875, %v882, %v886
        %v888 = vshrl.u32 %v856, 16
        %v890 = vor.u32 %v888, %v886
        %v892 = vshll.u32 %v857, 16
        %v894 = vrot.slane %v892, 1
        %v895 = vsel %vm875, %v890, %v894
        %v914 = vunpack.c.l.b16 %v859
        %v915 = vunpack.c.l.b16 %v860
        %v916 = vunpack.c.l.b16 %v861
        %v917 = vunpack.c.l.b16 %v862
        %v918 = vunpack.c.l.b16 %v863
        %v919 = vunpack.c.l.b16 %v864
        %v920 = vunpack.c.l.b16 %v865
        %v921 = vunpack.c.l.b16 %v866
        %v922 = vunpack.c.l.b16 %v867
        %v923 = vunpack.c.l.b16 %v868
        %v924 = vunpack.c.l.b16 %v869
        %v925 = vunpack.c.l.b16 %v870
        %v926 = vunpack.c.l.b16 %v871
        %v927 = vunpack.c.l.b16 %v872
        %v928 = vunpack.c.l.b16 %v873
        %v929 = vunpack.c.l.b16 %v874
        %v930 = vpack.c.b16 %v915, %v914
        %v931 = vpack.c.b16 %v917, %v916
        %v932 = vpack.c.b16 %v919, %v918
        %v933 = vpack.c.b16 %v921, %v920
        %v934 = vpack.c.b16 %v923, %v922
        %v935 = vpack.c.b16 %v925, %v924
        %v936 = vpack.c.b16 %v927, %v926
        %v937 = vpack.c.b16 %v929, %v928
        %946 = vmatprep.subr.bf16.mxu0 0
        %947 = vmatpush1.bf16.msra.mxu0 %v930
        %948 = vmatprep.subr.bf16.mxu0 0
        %949 = vmatpush1.bf16.msra.mxu0 %v931
        %950 = vmatprep.subr.bf16.mxu0 0
        %951 = vmatpush1.bf16.msra.mxu0 %v932
        %952 = vmatprep.subr.bf16.mxu0 0
        %953 = vmatpush1.bf16.msra.mxu0 %v933
        %954 = vmatprep.subr.bf16.mxu0 0
        %955 = vmatpush1.bf16.msra.mxu0 %v934
        %956 = vmatprep.subr.bf16.mxu0 0
        %957 = vmatpush1.bf16.msra.mxu0 %v935
        %958 = vmatprep.subr.bf16.mxu0 0
        %959 = vmatpush1.bf16.msra.mxu0 %v936
        %960 = vmatprep.subr.bf16.mxu0 0
        %961 = vmatpush1.bf16.msra.mxu0 %v937
        %962 = vmatprep.subr.bf16.mxu0 0
        %963 = vmatpush1.bf16.msra.mxu0 0
        %964 = vmatprep.subr.bf16.mxu0 0
        %965 = vmatpush1.bf16.msra.mxu0 0
        %966 = vmatprep.subr.bf16.mxu0 0
        %967 = vmatpush1.bf16.msra.mxu0 0
        %968 = vmatprep.subr.bf16.mxu0 0
        %969 = vmatpush1.bf16.msra.mxu0 0
        %970 = vmatprep.subr.bf16.mxu0 0
        %971 = vmatpush1.bf16.msra.mxu0 0
        %972 = vmatprep.subr.bf16.mxu0 0
        %973 = vmatpush1.bf16.msra.mxu0 0
        %974 = vmatprep.subr.bf16.mxu0 0
        %975 = vmatpush1.bf16.msra.mxu0 0
        %976 = vmatprep.subr.bf16.mxu0 0
        %977 = vmatpush1.bf16.msra.mxu0 0
        %978 = vmatprep.mubr.bf16.mxu0 0
        %979 = vmatmul.mubr.bf16.gmra.mrb[0].mxu0 %v887
        %v980 = vpop.f32.mrb[0].mxu0
        %v981 = vadd.f32 0.0, %v980
        %v982 = vpop.f32.mrb[0].mxu0
        %v983 = vpop.f32.mrb[0].mxu0
        %v984 = vadd.f32 0.0, %v983
        %v985 = vpop.f32.mrb[0].mxu0
        %986 = vmatprep.mubr.bf16.mxu0 0
        %987 = vmatmul.mubr.bf16.gmra.mrb[0].mxu0 %v895
        %v988 = vpop.f32.mrb[0].mxu0
        %v989 = vpop.f32.mrb[0].mxu0
        %v990 = vpop.f32.mrb[0].mxu0
        %v991 = vpop.f32.mrb[0].mxu0
        %992 = vdwg.mxu0
        %v993 = vadd.f32 %v853, %v981
        %v994 = vadd.f32 %v854, %v984
        %v995 = vld [vmem:[#allocation2 + $0x8] sm:$0xfe]
        %s996 = scalar_lea.vmem [#allocation7], 320
        %v997 = vld [vmem:[%s996] sm:$0xf]
        %v998 = vld [vmem:[%s996 + $0x4] sm:$0xf]
        %v999 = vld [vmem:[%s996 + $0x8] sm:$0xf]
        %v1000 = vld [vmem:[%s996 + $0xc] sm:$0xf]
        %v1001 = vld [vmem:[%s996 + $0x10] sm:$0xf]
        %v1002 = vld [vmem:[%s996 + $0x14] sm:$0xf]
        %v1003 = vld [vmem:[%s996 + $0x18] sm:$0xf]
        %v1004 = vld [vmem:[%s996 + $0x1c] sm:$0xf]
        %v1005 = vld [vmem:[%s996 + $0x20] sm:$0xf]
        %v1006 = vld [vmem:[%s996 + $0x24] sm:$0xf]
        %v1007 = vld [vmem:[%s996 + $0x28] sm:$0xf]
        %v1008 = vld [vmem:[%s996 + $0x2c] sm:$0xf]
        %v1009 = vld [vmem:[%s996 + $0x30] sm:$0xf]
        %v1010 = vld [vmem:[%s996 + $0x34] sm:$0xf]
        %v1011 = vld [vmem:[%s996 + $0x38] sm:$0xf]
        %v1012 = vld [vmem:[%s996 + $0x3c] sm:$0xf]
        %vm1016 = vcmask 1046528
        %v1017 = vrot.slane %v995, 1
        %v1018 = vrot.slane %v856, 1
        %v1019 = vsel %vm1016, %v1017, %v1018
        %v1020 = vrot.slane %v857, 1
        %v1021 = vsel %vm1016, %v1018, %v1020
        %v1040 = vunpack.c.l.b16 %v997
        %v1041 = vunpack.c.l.b16 %v998
        %v1042 = vunpack.c.l.b16 %v999
        %v1043 = vunpack.c.l.b16 %v1000
        %v1044 = vunpack.c.l.b16 %v1001
        %v1045 = vunpack.c.l.b16 %v1002
        %v1046 = vunpack.c.l.b16 %v1003
        %v1047 = vunpack.c.l.b16 %v1004
        %v1048 = vunpack.c.l.b16 %v1005
        %v1049 = vunpack.c.l.b16 %v1006
        %v1050 = vunpack.c.l.b16 %v1007
        %v1051 = vunpack.c.l.b16 %v1008
        %v1052 = vunpack.c.l.b16 %v1009
        %v1053 = vunpack.c.l.b16 %v1010
        %v1054 = vunpack.c.l.b16 %v1011
        %v1055 = vunpack.c.l.b16 %v1012
        %v1056 = vpack.c.b16 %v1041, %v1040
        %v1057 = vpack.c.b16 %v1043, %v1042
        %v1058 = vpack.c.b16 %v1045, %v1044
        %v1059 = vpack.c.b16 %v1047, %v1046
        %v1060 = vpack.c.b16 %v1049, %v1048
        %v1061 = vpack.c.b16 %v1051, %v1050
        %v1062 = vpack.c.b16 %v1053, %v1052
        %v1063 = vpack.c.b16 %v1055, %v1054
        %1072 = vmatprep.subr.bf16.mxu0 0
        %1073 = vmatpush1.bf16.msra.mxu0 %v1056
        %1074 = vmatprep.subr.bf16.mxu0 0
        %1075 = vmatpush1.bf16.msra.mxu0 %v1057
        %1076 = vmatprep.subr.bf16.mxu0 0
        %1077 = vmatpush1.bf16.msra.mxu0 %v1058
        %1078 = vmatprep.subr.bf16.mxu0 0
        %1079 = vmatpush1.bf16.msra.mxu0 %v1059
        %1080 = vmatprep.subr.bf16.mxu0 0
        %1081 = vmatpush1.bf16.msra.mxu0 %v1060
        %1082 = vmatprep.subr.bf16.mxu0 0
        %1083 = vmatpush1.bf16.msra.mxu0 %v1061
        %1084 = vmatprep.subr.bf16.mxu0 0
        %1085 = vmatpush1.bf16.msra.mxu0 %v1062
        %1086 = vmatprep.subr.bf16.mxu0 0
        %1087 = vmatpush1.bf16.msra.mxu0 %v1063
        %1088 = vmatprep.subr.bf16.mxu0 0
        %1089 = vmatpush1.bf16.msra.mxu0 0
        %1090 = vmatprep.subr.bf16.mxu0 0
        %1091 = vmatpush1.bf16.msra.mxu0 0
        %1092 = vmatprep.subr.bf16.mxu0 0
        %1093 = vmatpush1.bf16.msra.mxu0 0
        %1094 = vmatprep.subr.bf16.mxu0 0
        %1095 = vmatpush1.bf16.msra.mxu0 0
        %1096 = vmatprep.subr.bf16.mxu0 0
        %1097 = vmatpush1.bf16.msra.mxu0 0
        %1098 = vmatprep.subr.bf16.mxu0 0
        %1099 = vmatpush1.bf16.msra.mxu0 0
        %1100 = vmatprep.subr.bf16.mxu0 0
        %1101 = vmatpush1.bf16.msra.mxu0 0
        %1102 = vmatprep.subr.bf16.mxu0 0
        %1103 = vmatpush1.bf16.msra.mxu0 0
        %1104 = vmatprep.mubr.bf16.mxu0 0
        %1105 = vmatmul.mubr.bf16.gmra.mrb[0].mxu0 %v1019
        %v1106 = vpop.f32.mrb[0].mxu0
        %v1107 = vadd.f32 0.0, %v1106
        %v1108 = vpop.f32.mrb[0].mxu0
        %v1109 = vpop.f32.mrb[0].mxu0
        %v1110 = vadd.f32 0.0, %v1109
        %v1111 = vpop.f32.mrb[0].mxu0
        %1112 = vmatprep.mubr.bf16.mxu0 0
        %1113 = vmatmul.mubr.bf16.gmra.mrb[0].mxu0 %v1021
        %v1114 = vpop.f32.mrb[0].mxu0
        %v1115 = vpop.f32.mrb[0].mxu0
        %v1116 = vpop.f32.mrb[0].mxu0
        %v1117 = vpop.f32.mrb[0].mxu0
        %1118 = vdwg.mxu0
        %v1119 = vadd.f32 %v993, %v1107
        %v1120 = vadd.f32 %v994, %v1110
        %v1121 = vld [vmem:[#allocation2 + $0x18] sm:$0x3]
        %s1122 = scalar_lea.vmem [#allocation7], 384
        %v1123 = vld [vmem:[%s1122] sm:$0xf]
        %v1124 = vld [vmem:[%s1122 + $0x4] sm:$0xf]
        %v1125 = vld [vmem:[%s1122 + $0x8] sm:$0xf]
        %v1126 = vld [vmem:[%s1122 + $0xc] sm:$0xf]
        %v1127 = vld [vmem:[%s1122 + $0x10] sm:$0xf]
        %v1128 = vld [vmem:[%s1122 + $0x14] sm:$0xf]
        %v1129 = vld [vmem:[%s1122 + $0x18] sm:$0xf]
        %v1130 = vld [vmem:[%s1122 + $0x1c] sm:$0xf]
        %v1131 = vld [vmem:[%s1122 + $0x20] sm:$0xf]
        %v1132 = vld [vmem:[%s1122 + $0x24] sm:$0xf]
        %v1133 = vld [vmem:[%s1122 + $0x28] sm:$0xf]
        %v1134 = vld [vmem:[%s1122 + $0x2c] sm:$0xf]
        %v1135 = vld [vmem:[%s1122 + $0x30] sm:$0xf]
        %v1136 = vld [vmem:[%s1122 + $0x34] sm:$0xf]
        %v1137 = vld [vmem:[%s1122 + $0x38] sm:$0xf]
        %v1138 = vld [vmem:[%s1122 + $0x3c] sm:$0xf]
        %vm1139 = vsmask.f32 6400
        %v1141 = vshrl.u32 %v995, 16
        %v1143 = vrot.slane %v1141, 1
        %v1144 = vshll.u32 %v995, 16
        %v1146 = vrot.slane %v1144, 2
        %v1147 = vor.u32 %v1143, %v1146
        %v1148 = vrot.slane %v888, 1
        %v1149 = vrot.slane %v884, 2
        %v1150 = vor.u32 %v1148, %v1149
        %v1151 = vsel %vm1139, %v1147, %v1150
        %v1153 = vshrl.u32 %v1121, 16
        %v1155 = vrot.slane %v1153, 1
        %v1156 = vshll.u32 %v1121, 16
        %v1158 = vrot.slane %v1156, 2
        %v1159 = vor.u32 %v1155, %v1158
        %v1160 = vsel %vm1139, %v1150, %v1159
        %v1179 = vunpack.c.l.b16 %v1123
        %v1180 = vunpack.c.l.b16 %v1124
        %v1181 = vunpack.c.l.b16 %v1125
        %v1182 = vunpack.c.l.b16 %v1126
        %v1183 = vunpack.c.l.b16 %v1127
        %v1184 = vunpack.c.l.b16 %v1128
        %v1185 = vunpack.c.l.b16 %v1129
        %v1186 = vunpack.c.l.b16 %v1130
        %v1187 = vunpack.c.l.b16 %v1131
        %v1188 = vunpack.c.l.b16 %v1132
        %v1189 = vunpack.c.l.b16 %v1133
        %v1190 = vunpack.c.l.b16 %v1134
        %v1191 = vunpack.c.l.b16 %v1135
        %v1192 = vunpack.c.l.b16 %v1136
        %v1193 = vunpack.c.l.b16 %v1137
        %v1194 = vunpack.c.l.b16 %v1138
        %v1195 = vpack.c.b16 %v1180, %v1179
        %v1196 = vpack.c.b16 %v1182, %v1181
        %v1197 = vpack.c.b16 %v1184, %v1183
        %v1198 = vpack.c.b16 %v1186, %v1185
        %v1199 = vpack.c.b16 %v1188, %v1187
        %v1200 = vpack.c.b16 %v1190, %v1189
        %v1201 = vpack.c.b16 %v1192, %v1191
        %v1202 = vpack.c.b16 %v1194, %v1193
        %1211 = vmatprep.subr.bf16.mxu0 0
        %1212 = vmatpush1.bf16.msra.mxu0 %v1195
        %1213 = vmatprep.subr.bf16.mxu0 0
        %1214 = vmatpush1.bf16.msra.mxu0 %v1196
        %1215 = vmatprep.subr.bf16.mxu0 0
        %1216 = vmatpush1.bf16.msra.mxu0 %v1197
        %1217 = vmatprep.subr.bf16.mxu0 0
        %1218 = vmatpush1.bf16.msra.mxu0 %v1198
        %1219 = vmatprep.subr.bf16.mxu0 0
        %1220 = vmatpush1.bf16.msra.mxu0 %v1199
        %1221 = vmatprep.subr.bf16.mxu0 0
        %1222 = vmatpush1.bf16.msra.mxu0 %v1200
        %1223 = vmatprep.subr.bf16.mxu0 0
        %1224 = vmatpush1.bf16.msra.mxu0 %v1201
        %1225 = vmatprep.subr.bf16.mxu0 0
        %1226 = vmatpush1.bf16.msra.mxu0 %v1202
        %1227 = vmatprep.subr.bf16.mxu0 0
        %1228 = vmatpush1.bf16.msra.mxu0 0
        %1229 = vmatprep.subr.bf16.mxu0 0
        %1230 = vmatpush1.bf16.msra.mxu0 0
        %1231 = vmatprep.subr.bf16.mxu0 0
        %1232 = vmatpush1.bf16.msra.mxu0 0
        %1233 = vmatprep.subr.bf16.mxu0 0
        %1234 = vmatpush1.bf16.msra.mxu0 0
        %1235 = vmatprep.subr.bf16.mxu0 0
        %1236 = vmatpush1.bf16.msra.mxu0 0
        %1237 = vmatprep.subr.bf16.mxu0 0
        %1238 = vmatpush1.bf16.msra.mxu0 0
        %1239 = vmatprep.subr.bf16.mxu0 0
        %1240 = vmatpush1.bf16.msra.mxu0 0
        %1241 = vmatprep.subr.bf16.mxu0 0
        %1242 = vmatpush1.bf16.msra.mxu0 0
        %1243 = vmatprep.mubr.bf16.mxu0 0
        %1244 = vmatmul.mubr.bf16.gmra.mrb[0].mxu0 %v1151
        %v1245 = vpop.f32.mrb[0].mxu0
        %v1246 = vadd.f32 0.0, %v1245
        %v1247 = vpop.f32.mrb[0].mxu0
        %v1248 = vpop.f32.mrb[0].mxu0
        %v1249 = vadd.f32 0.0, %v1248
        %v1250 = vpop.f32.mrb[0].mxu0
        %1251 = vmatprep.mubr.bf16.mxu0 0
        %1252 = vmatmul.mubr.bf16.gmra.mrb[0].mxu0 %v1160
        %v1253 = vpop.f32.mrb[0].mxu0
        %v1254 = vpop.f32.mrb[0].mxu0
        %v1255 = vpop.f32.mrb[0].mxu0
        %v1256 = vpop.f32.mrb[0].mxu0
        %1257 = vdwg.mxu0
        %v1258 = vadd.f32 %v1119, %v1246
        %v1259 = vadd.f32 %v1120, %v1249
        %v1261 = vlaneseq
        %v1262 = vshrl.u32 %v1261, 7
        %v1263 = vsub.s32 0, %v1262
        %v1264 = vrot.slane %v337, %v1263
        %v1266 = vmul.f32 %v1258, %v1264
        %v1267 = vmul.f32 %v1259, %v1264
        %v1269 = vlaneseq
        %v1270 = vshrl.u32 %v1269, 7
        %v1271 = vsub.s32 0, %v1270
        %v1272 = vrot.slane %v338, %v1271
        %v1274 = vadd.f32 %v1266, %v1272
        %v1275 = vadd.f32 %v1267, %v1272
        %v1276 = vxor.u32 %v1274, 2147483648
        %v1277 = vxor.u32 %v1275, 2147483648
        %v1278 = vmul.f32 %v1276, 1.442695
        %v1279 = vpow.pop %v1278
        %v1280 = vmul.f32 %v1277, 1.442695
        %v1281 = vpow.pop %v1280
        %v1282 = vadd.f32 %v1279, 1.0
        %v1283 = vadd.f32 %v1281, 1.0
        %v1284 = vrcp.pop %v1282
        %v1285 = vmul.f32 1.0, %v1284
        %v1286 = vrcp.pop %v1283
        %v1287 = vmul.f32 1.0, %v1286
        %v1288 = vmul.f32 %v1274, %v1285
        %v1289 = vmul.f32 %v1275, %v1287
        %v1290 = vpack.c.bf16 %v1289, %v1288
        %1291 = vst [vmem:[#allocation3 + $0x8] sm:$0xff] %v1290
        %v1292 = vld [vmem:[#allocation3] sm:$0xc0]
        %v1293 = vld [vmem:[#allocation3 + $0x8] sm:$0xff]
        %v1294 = vld [vmem:[#allocation3 + $0x10] sm:$0x7f]
        %v1295 = vld [vmem:[#allocation9] sm:$0xf]
        %v1296 = vld [vmem:[#allocation9 + $0x4] sm:$0xf]
        %v1297 = vld [vmem:[#allocation9 + $0x8] sm:$0xf]
        %v1298 = vld [vmem:[#allocation9 + $0xc] sm:$0xf]
        %v1299 = vld [vmem:[#allocation9 + $0x10] sm:$0xf]
        %v1300 = vld [vmem:[#allocation9 + $0x14] sm:$0xf]
        %v1301 = vld [vmem:[#allocation9 + $0x18] sm:$0xf]
        %v1302 = vld [vmem:[#allocation9 + $0x1c] sm:$0xf]
        %v1303 = vld [vmem:[#allocation9 + $0x20] sm:$0xf]
        %v1304 = vld [vmem:[#allocation9 + $0x24] sm:$0xf]
        %v1305 = vld [vmem:[#allocation9 + $0x28] sm:$0xf]
        %v1306 = vld [vmem:[#allocation9 + $0x2c] sm:$0xf]
        %v1307 = vld [vmem:[#allocation9 + $0x30] sm:$0xf]
        %v1308 = vld [vmem:[#allocation9 + $0x34] sm:$0xf]
        %v1309 = vld [vmem:[#allocation9 + $0x38] sm:$0xf]
        %v1310 = vld [vmem:[#allocation9 + $0x3c] sm:$0xf]
        %v1311 = vld [vmem:[#allocation3] sm:$0x80]
        %s1312 = scalar_lea.vmem [#allocation9], 64
        %v1313 = vld [vmem:[%s1312] sm:$0xf]
        %v1314 = vld [vmem:[%s1312 + $0x4] sm:$0xf]
        %v1315 = vld [vmem:[%s1312 + $0x8] sm:$0xf]
        %v1316 = vld [vmem:[%s1312 + $0xc] sm:$0xf]
        %v1317 = vld [vmem:[%s1312 + $0x10] sm:$0xf]
        %v1318 = vld [vmem:[%s1312 + $0x14] sm:$0xf]
        %v1319 = vld [vmem:[%s1312 + $0x18] sm:$0xf]
        %v1320 = vld [vmem:[%s1312 + $0x1c] sm:$0xf]
        %v1321 = vld [vmem:[%s1312 + $0x20] sm:$0xf]
        %v1322 = vld [vmem:[%s1312 + $0x24] sm:$0xf]
        %v1323 = vld [vmem:[%s1312 + $0x28] sm:$0xf]
        %v1324 = vld [vmem:[%s1312 + $0x2c] sm:$0xf]
        %v1325 = vld [vmem:[%s1312 + $0x30] sm:$0xf]
        %v1326 = vld [vmem:[%s1312 + $0x34] sm:$0xf]
        %v1327 = vld [vmem:[%s1312 + $0x38] sm:$0xf]
        %v1328 = vld [vmem:[%s1312 + $0x3c] sm:$0xf]
        %v1332 = vrot.slane %v1311, 7
        %v1333 = vrot.slane %v1293, 7
        %v1334 = vsel %vm381, %v1332, %v1333
        %v1335 = vrot.slane %v1294, 7
        %v1336 = vsel %vm381, %v1333, %v1335
        %v1355 = vunpack.c.l.b16 %v1313
        %v1356 = vunpack.c.l.b16 %v1314
        %v1357 = vunpack.c.l.b16 %v1315
        %v1358 = vunpack.c.l.b16 %v1316
        %v1359 = vunpack.c.l.b16 %v1317
        %v1360 = vunpack.c.l.b16 %v1318
        %v1361 = vunpack.c.l.b16 %v1319
        %v1362 = vunpack.c.l.b16 %v1320
        %v1363 = vunpack.c.l.b16 %v1321
        %v1364 = vunpack.c.l.b16 %v1322
        %v1365 = vunpack.c.l.b16 %v1323
        %v1366 = vunpack.c.l.b16 %v1324
        %v1367 = vunpack.c.l.b16 %v1325
        %v1368 = vunpack.c.l.b16 %v1326
        %v1369 = vunpack.c.l.b16 %v1327
        %v1370 = vunpack.c.l.b16 %v1328
        %v1371 = vpack.c.b16 %v1356, %v1355
        %v1372 = vpack.c.b16 %v1358, %v1357
        %v1373 = vpack.c.b16 %v1360, %v1359
        %v1374 = vpack.c.b16 %v1362, %v1361
        %v1375 = vpack.c.b16 %v1364, %v1363
        %v1376 = vpack.c.b16 %v1366, %v1365
        %v1377 = vpack.c.b16 %v1368, %v1367
        %v1378 = vpack.c.b16 %v1370, %v1369
        %1387 = vmatprep.subr.bf16.mxu0 0
        %1388 = vmatpush1.bf16.msra.mxu0 %v1371
        %1389 = vmatprep.subr.bf16.mxu0 0
        %1390 = vmatpush1.bf16.msra.mxu0 %v1372
        %1391 = vmatprep.subr.bf16.mxu0 0
        %1392 = vmatpush1.bf16.msra.mxu0 %v1373
        %1393 = vmatprep.subr.bf16.mxu0 0
        %1394 = vmatpush1.bf16.msra.mxu0 %v1374
        %1395 = vmatprep.subr.bf16.mxu0 0
        %1396 = vmatpush1.bf16.msra.mxu0 %v1375
        %1397 = vmatprep.subr.bf16.mxu0 0
        %1398 = vmatpush1.bf16.msra.mxu0 %v1376
        %1399 = vmatprep.subr.bf16.mxu0 0
        %1400 = vmatpush1.bf16.msra.mxu0 %v1377
        %1401 = vmatprep.subr.bf16.mxu0 0
        %1402 = vmatpush1.bf16.msra.mxu0 %v1378
        %1403 = vmatprep.subr.bf16.mxu0 0
        %1404 = vmatpush1.bf16.msra.mxu0 0
        %1405 = vmatprep.subr.bf16.mxu0 0
        %1406 = vmatpush1.bf16.msra.mxu0 0
        %1407 = vmatprep.subr.bf16.mxu0 0
        %1408 = vmatpush1.bf16.msra.mxu0 0
        %1409 = vmatprep.subr.bf16.mxu0 0
        %1410 = vmatpush1.bf16.msra.mxu0 0
        %1411 = vmatprep.subr.bf16.mxu0 0
        %1412 = vmatpush1.bf16.msra.mxu0 0
        %1413 = vmatprep.subr.bf16.mxu0 0
        %1414 = vmatpush1.bf16.msra.mxu0 0
        %1415 = vmatprep.subr.bf16.mxu0 0
        %1416 = vmatpush1.bf16.msra.mxu0 0
        %1417 = vmatprep.subr.bf16.mxu0 0
        %1418 = vmatpush1.bf16.msra.mxu0 0
        %1419 = vmatprep.mubr.bf16.mxu0 0
        %1420 = vmatmul.mubr.bf16.gmra.mrb[0].mxu0 %v1334
        %v1421 = vpop.f32.mrb[0].mxu0
        %v1422 = vadd.f32 0.0, %v1421
        %v1423 = vpop.f32.mrb[0].mxu0
        %v1424 = vpop.f32.mrb[0].mxu0
        %v1425 = vadd.f32 0.0, %v1424
        %v1426 = vpop.f32.mrb[0].mxu0
        %1427 = vmatprep.mubr.bf16.mxu0 0
        %1428 = vmatmul.mubr.bf16.gmra.mrb[0].mxu0 %v1336
        %v1429 = vpop.f32.mrb[0].mxu0
        %v1430 = vpop.f32.mrb[0].mxu0
        %v1431 = vpop.f32.mrb[0].mxu0
        %v1432 = vpop.f32.mrb[0].mxu0
        %1433 = vdwg.mxu0
        %v1435 = vshrl.u32 %v1292, 16
        %v1437 = vrot.slane %v1435, 6
        %v1438 = vshll.u32 %v1292, 16
        %v1440 = vrot.slane %v1438, 7
        %v1441 = vor.u32 %v1437, %v1440
        %v1443 = vshrl.u32 %v1293, 16
        %v1445 = vrot.slane %v1443, 6
        %v1446 = vshll.u32 %v1293, 16
        %v1448 = vrot.slane %v1446, 7
        %v1449 = vor.u32 %v1445, %v1448
        %v1450 = vsel %vm484, %v1441, %v1449
        %v1452 = vshrl.u32 %v1294, 16
        %v1454 = vrot.slane %v1452, 6
        %v1455 = vshll.u32 %v1294, 16
        %v1457 = vrot.slane %v1455, 7
        %v1458 = vor.u32 %v1454, %v1457
        %v1459 = vsel %vm484, %v1449, %v1458
        %v1478 = vunpack.c.l.b16 %v1295
        %v1479 = vunpack.c.l.b16 %v1296
        %v1480 = vunpack.c.l.b16 %v1297
        %v1481 = vunpack.c.l.b16 %v1298
        %v1482 = vunpack.c.l.b16 %v1299
        %v1483 = vunpack.c.l.b16 %v1300
        %v1484 = vunpack.c.l.b16 %v1301
        %v1485 = vunpack.c.l.b16 %v1302
        %v1486 = vunpack.c.l.b16 %v1303
        %v1487 = vunpack.c.l.b16 %v1304
        %v1488 = vunpack.c.l.b16 %v1305
        %v1489 = vunpack.c.l.b16 %v1306
        %v1490 = vunpack.c.l.b16 %v1307
        %v1491 = vunpack.c.l.b16 %v1308
        %v1492 = vunpack.c.l.b16 %v1309
        %v1493 = vunpack.c.l.b16 %v1310
        %v1494 = vpack.c.b16 %v1479, %v1478
        %v1495 = vpack.c.b16 %v1481, %v1480
        %v1496 = vpack.c.b16 %v1483, %v1482
        %v1497 = vpack.c.b16 %v1485, %v1484
        %v1498 = vpack.c.b16 %v1487, %v1486
        %v1499 = vpack.c.b16 %v1489, %v1488
        %v1500 = vpack.c.b16 %v1491, %v1490
        %v1501 = vpack.c.b16 %v1493, %v1492
        %1510 = vmatprep.subr.bf16.mxu0 0
        %1511 = vmatpush1.bf16.msra.mxu0 %v1494
        %1512 = vmatprep.subr.bf16.mxu0 0
        %1513 = vmatpush1.bf16.msra.mxu0 %v1495
        %1514 = vmatprep.subr.bf16.mxu0 0
        %1515 = vmatpush1.bf16.msra.mxu0 %v1496
        %1516 = vmatprep.subr.bf16.mxu0 0
        %1517 = vmatpush1.bf16.msra.mxu0 %v1497
        %1518 = vmatprep.subr.bf16.mxu0 0
        %1519 = vmatpush1.bf16.msra.mxu0 %v1498
        %1520 = vmatprep.subr.bf16.mxu0 0
        %1521 = vmatpush1.bf16.msra.mxu0 %v1499
        %1522 = vmatprep.subr.bf16.mxu0 0
        %1523 = vmatpush1.bf16.msra.mxu0 %v1500
        %1524 = vmatprep.subr.bf16.mxu0 0
        %1525 = vmatpush1.bf16.msra.mxu0 %v1501
        %1526 = vmatprep.subr.bf16.mxu0 0
        %1527 = vmatpush1.bf16.msra.mxu0 0
        %1528 = vmatprep.subr.bf16.mxu0 0
        %1529 = vmatpush1.bf16.msra.mxu0 0
        %1530 = vmatprep.subr.bf16.mxu0 0
        %1531 = vmatpush1.bf16.msra.mxu0 0
        %1532 = vmatprep.subr.bf16.mxu0 0
        %1533 = vmatpush1.bf16.msra.mxu0 0
        %1534 = vmatprep.subr.bf16.mxu0 0
        %1535 = vmatpush1.bf16.msra.mxu0 0
        %1536 = vmatprep.subr.bf16.mxu0 0
        %1537 = vmatpush1.bf16.msra.mxu0 0
        %1538 = vmatprep.subr.bf16.mxu0 0
        %1539 = vmatpush1.bf16.msra.mxu0 0
        %1540 = vmatprep.subr.bf16.mxu0 0
        %1541 = vmatpush1.bf16.msra.mxu0 0
        %1542 = vmatprep.mubr.bf16.mxu0 0
        %1543 = vmatmul.mubr.bf16.gmra.mrb[0].mxu0 %v1450
        %v1544 = vpop.f32.mrb[0].mxu0
        %v1545 = vadd.f32 %v1422, %v1544
        %v1546 = vpop.f32.mrb[0].mxu0
        %v1547 = vpop.f32.mrb[0].mxu0
        %v1548 = vadd.f32 %v1425, %v1547
        %v1549 = vpop.f32.mrb[0].mxu0
        %1550 = vmatprep.mubr.bf16.mxu0 0
        %1551 = vmatmul.mubr.bf16.gmra.mrb[0].mxu0 %v1459
        %v1552 = vpop.f32.mrb[0].mxu0
        %v1553 = vpop.f32.mrb[0].mxu0
        %v1554 = vpop.f32.mrb[0].mxu0
        %v1555 = vpop.f32.mrb[0].mxu0
        %1556 = vdwg.mxu0
        %v1557 = vld [vmem:[#allocation3 + $0x10] sm:$0xff]
        %s1558 = scalar_lea.vmem [#allocation9], 128
        %v1559 = vld [vmem:[%s1558] sm:$0xf]
        %v1560 = vld [vmem:[%s1558 + $0x4] sm:$0xf]
        %v1561 = vld [vmem:[%s1558 + $0x8] sm:$0xf]
        %v1562 = vld [vmem:[%s1558 + $0xc] sm:$0xf]
        %v1563 = vld [vmem:[%s1558 + $0x10] sm:$0xf]
        %v1564 = vld [vmem:[%s1558 + $0x14] sm:$0xf]
        %v1565 = vld [vmem:[%s1558 + $0x18] sm:$0xf]
        %v1566 = vld [vmem:[%s1558 + $0x1c] sm:$0xf]
        %v1567 = vld [vmem:[%s1558 + $0x20] sm:$0xf]
        %v1568 = vld [vmem:[%s1558 + $0x24] sm:$0xf]
        %v1569 = vld [vmem:[%s1558 + $0x28] sm:$0xf]
        %v1570 = vld [vmem:[%s1558 + $0x2c] sm:$0xf]
        %v1571 = vld [vmem:[%s1558 + $0x30] sm:$0xf]
        %v1572 = vld [vmem:[%s1558 + $0x34] sm:$0xf]
        %v1573 = vld [vmem:[%s1558 + $0x38] sm:$0xf]
        %v1574 = vld [vmem:[%s1558 + $0x3c] sm:$0xf]
        %v1576 = vshrl.u32 %v1311, 16
        %v1578 = vrot.slane %v1576, 7
        %v1579 = vrot.slane %v1443, 7
        %v1580 = vor.u32 %v1579, %v1446
        %v1581 = vsel %vm626, %v1578, %v1580
        %v1583 = vshrl.u32 %v1557, 16
        %v1585 = vrot.slane %v1583, 7
        %v1586 = vshll.u32 %v1557, 16
        %v1588 = vor.u32 %v1585, %v1586
        %v1589 = vsel %vm626, %v1579, %v1588
        %v1608 = vunpack.c.l.b16 %v1559
        %v1609 = vunpack.c.l.b16 %v1560
        %v1610 = vunpack.c.l.b16 %v1561
        %v1611 = vunpack.c.l.b16 %v1562
        %v1612 = vunpack.c.l.b16 %v1563
        %v1613 = vunpack.c.l.b16 %v1564
        %v1614 = vunpack.c.l.b16 %v1565
        %v1615 = vunpack.c.l.b16 %v1566
        %v1616 = vunpack.c.l.b16 %v1567
        %v1617 = vunpack.c.l.b16 %v1568
        %v1618 = vunpack.c.l.b16 %v1569
        %v1619 = vunpack.c.l.b16 %v1570
        %v1620 = vunpack.c.l.b16 %v1571
        %v1621 = vunpack.c.l.b16 %v1572
        %v1622 = vunpack.c.l.b16 %v1573
        %v1623 = vunpack.c.l.b16 %v1574
        %v1624 = vpack.c.b16 %v1609, %v1608
        %v1625 = vpack.c.b16 %v1611, %v1610
        %v1626 = vpack.c.b16 %v1613, %v1612
        %v1627 = vpack.c.b16 %v1615, %v1614
        %v1628 = vpack.c.b16 %v1617, %v1616
        %v1629 = vpack.c.b16 %v1619, %v1618
        %v1630 = vpack.c.b16 %v1621, %v1620
        %v1631 = vpack.c.b16 %v1623, %v1622
        %1640 = vmatprep.subr.bf16.mxu0 0
        %1641 = vmatpush1.bf16.msra.mxu0 %v1624
        %1642 = vmatprep.subr.bf16.mxu0 0
        %1643 = vmatpush1.bf16.msra.mxu0 %v1625
        %1644 = vmatprep.subr.bf16.mxu0 0
        %1645 = vmatpush1.bf16.msra.mxu0 %v1626
        %1646 = vmatprep.subr.bf16.mxu0 0
        %1647 = vmatpush1.bf16.msra.mxu0 %v1627
        %1648 = vmatprep.subr.bf16.mxu0 0
        %1649 = vmatpush1.bf16.msra.mxu0 %v1628
        %1650 = vmatprep.subr.bf16.mxu0 0
        %1651 = vmatpush1.bf16.msra.mxu0 %v1629
        %1652 = vmatprep.subr.bf16.mxu0 0
        %1653 = vmatpush1.bf16.msra.mxu0 %v1630
        %1654 = vmatprep.subr.bf16.mxu0 0
        %1655 = vmatpush1.bf16.msra.mxu0 %v1631
        %1656 = vmatprep.subr.bf16.mxu0 0
        %1657 = vmatpush1.bf16.msra.mxu0 0
        %1658 = vmatprep.subr.bf16.mxu0 0
        %1659 = vmatpush1.bf16.msra.mxu0 0
        %1660 = vmatprep.subr.bf16.mxu0 0
        %1661 = vmatpush1.bf16.msra.mxu0 0
        %1662 = vmatprep.subr.bf16.mxu0 0
        %1663 = vmatpush1.bf16.msra.mxu0 0
        %1664 = vmatprep.subr.bf16.mxu0 0
        %1665 = vmatpush1.bf16.msra.mxu0 0
        %1666 = vmatprep.subr.bf16.mxu0 0
        %1667 = vmatpush1.bf16.msra.mxu0 0
        %1668 = vmatprep.subr.bf16.mxu0 0
        %1669 = vmatpush1.bf16.msra.mxu0 0
        %1670 = vmatprep.subr.bf16.mxu0 0
        %1671 = vmatpush1.bf16.msra.mxu0 0
        %1672 = vmatprep.mubr.bf16.mxu0 0
        %1673 = vmatmul.mubr.bf16.gmra.mrb[0].mxu0 %v1581
        %v1674 = vpop.f32.mrb[0].mxu0
        %v1675 = vadd.f32 0.0, %v1674
        %v1676 = vpop.f32.mrb[0].mxu0
        %v1677 = vpop.f32.mrb[0].mxu0
        %v1678 = vadd.f32 0.0, %v1677
        %v1679 = vpop.f32.mrb[0].mxu0
        %1680 = vmatprep.mubr.bf16.mxu0 0
        %1681 = vmatmul.mubr.bf16.gmra.mrb[0].mxu0 %v1589
        %v1682 = vpop.f32.mrb[0].mxu0
        %v1683 = vpop.f32.mrb[0].mxu0
        %v1684 = vpop.f32.mrb[0].mxu0
        %v1685 = vpop.f32.mrb[0].mxu0
        %1686 = vdwg.mxu0
        %v1687 = vadd.f32 %v1545, %v1675
        %v1688 = vadd.f32 %v1548, %v1678
        %s1689 = scalar_lea.vmem [#allocation9], 192
        %v1690 = vld [vmem:[%s1689] sm:$0xf]
        %v1691 = vld [vmem:[%s1689 + $0x4] sm:$0xf]
        %v1692 = vld [vmem:[%s1689 + $0x8] sm:$0xf]
        %v1693 = vld [vmem:[%s1689 + $0xc] sm:$0xf]
        %v1694 = vld [vmem:[%s1689 + $0x10] sm:$0xf]
        %v1695 = vld [vmem:[%s1689 + $0x14] sm:$0xf]
        %v1696 = vld [vmem:[%s1689 + $0x18] sm:$0xf]
        %v1697 = vld [vmem:[%s1689 + $0x1c] sm:$0xf]
        %v1698 = vld [vmem:[%s1689 + $0x20] sm:$0xf]
        %v1699 = vld [vmem:[%s1689 + $0x24] sm:$0xf]
        %v1700 = vld [vmem:[%s1689 + $0x28] sm:$0xf]
        %v1701 = vld [vmem:[%s1689 + $0x2c] sm:$0xf]
        %v1702 = vld [vmem:[%s1689 + $0x30] sm:$0xf]
        %v1703 = vld [vmem:[%s1689 + $0x34] sm:$0xf]
        %v1704 = vld [vmem:[%s1689 + $0x38] sm:$0xf]
        %v1705 = vld [vmem:[%s1689 + $0x3c] sm:$0xf]
        %v1722 = vunpack.c.l.b16 %v1690
        %v1723 = vunpack.c.l.b16 %v1691
        %v1724 = vunpack.c.l.b16 %v1692
        %v1725 = vunpack.c.l.b16 %v1693
        %v1726 = vunpack.c.l.b16 %v1694
        %v1727 = vunpack.c.l.b16 %v1695
        %v1728 = vunpack.c.l.b16 %v1696
        %v1729 = vunpack.c.l.b16 %v1697
        %v1730 = vunpack.c.l.b16 %v1698
        %v1731 = vunpack.c.l.b16 %v1699
        %v1732 = vunpack.c.l.b16 %v1700
        %v1733 = vunpack.c.l.b16 %v1701
        %v1734 = vunpack.c.l.b16 %v1702
        %v1735 = vunpack.c.l.b16 %v1703
        %v1736 = vunpack.c.l.b16 %v1704
        %v1737 = vunpack.c.l.b16 %v1705
        %v1738 = vpack.c.b16 %v1723, %v1722
        %v1739 = vpack.c.b16 %v1725, %v1724
        %v1740 = vpack.c.b16 %v1727, %v1726
        %v1741 = vpack.c.b16 %v1729, %v1728
        %v1742 = vpack.c.b16 %v1731, %v1730
        %v1743 = vpack.c.b16 %v1733, %v1732
        %v1744 = vpack.c.b16 %v1735, %v1734
        %v1745 = vpack.c.b16 %v1737, %v1736
        %1754 = vmatprep.subr.bf16.mxu0 0
        %1755 = vmatpush1.bf16.msra.mxu0 %v1738
        %1756 = vmatprep.subr.bf16.mxu0 0
        %1757 = vmatpush1.bf16.msra.mxu0 %v1739
        %1758 = vmatprep.subr.bf16.mxu0 0
        %1759 = vmatpush1.bf16.msra.mxu0 %v1740
        %1760 = vmatprep.subr.bf16.mxu0 0
        %1761 = vmatpush1.bf16.msra.mxu0 %v1741
        %1762 = vmatprep.subr.bf16.mxu0 0
        %1763 = vmatpush1.bf16.msra.mxu0 %v1742
        %1764 = vmatprep.subr.bf16.mxu0 0
        %1765 = vmatpush1.bf16.msra.mxu0 %v1743
        %1766 = vmatprep.subr.bf16.mxu0 0
        %1767 = vmatpush1.bf16.msra.mxu0 %v1744
        %1768 = vmatprep.subr.bf16.mxu0 0
        %1769 = vmatpush1.bf16.msra.mxu0 %v1745
        %1770 = vmatprep.subr.bf16.mxu0 0
        %1771 = vmatpush1.bf16.msra.mxu0 0
        %1772 = vmatprep.subr.bf16.mxu0 0
        %1773 = vmatpush1.bf16.msra.mxu0 0
        %1774 = vmatprep.subr.bf16.mxu0 0
        %1775 = vmatpush1.bf16.msra.mxu0 0
        %1776 = vmatprep.subr.bf16.mxu0 0
        %1777 = vmatpush1.bf16.msra.mxu0 0
        %1778 = vmatprep.subr.bf16.mxu0 0
        %1779 = vmatpush1.bf16.msra.mxu0 0
        %1780 = vmatprep.subr.bf16.mxu0 0
        %1781 = vmatpush1.bf16.msra.mxu0 0
        %1782 = vmatprep.subr.bf16.mxu0 0
        %1783 = vmatpush1.bf16.msra.mxu0 0
        %1784 = vmatprep.subr.bf16.mxu0 0
        %1785 = vmatpush1.bf16.msra.mxu0 0
        %1786 = vmatprep.mubr.bf16.mxu0 0
        %1787 = vmatmul.mubr.bf16.gmra.mrb[0].mxu0 %v1293
        %v1788 = vpop.f32.mrb[0].mxu0
        %v1789 = vadd.f32 0.0, %v1788
        %v1790 = vpop.f32.mrb[0].mxu0
        %v1791 = vpop.f32.mrb[0].mxu0
        %v1792 = vadd.f32 0.0, %v1791
        %v1793 = vpop.f32.mrb[0].mxu0
        %1794 = vmatprep.mubr.bf16.mxu0 0
        %1795 = vmatmul.mubr.bf16.gmra.mrb[0].mxu0 %v1557
        %v1796 = vpop.f32.mrb[0].mxu0
        %v1797 = vpop.f32.mrb[0].mxu0
        %v1798 = vpop.f32.mrb[0].mxu0
        %v1799 = vpop.f32.mrb[0].mxu0
        %1800 = vdwg.mxu0
        %v1801 = vadd.f32 %v1687, %v1789
        %v1802 = vadd.f32 %v1688, %v1792
        %v1803 = vld [vmem:[#allocation3 + $0x8] sm:$0xff]
        %v1804 = vld [vmem:[#allocation3 + $0x10] sm:$0xff]
        %v1805 = vld [vmem:[#allocation3 + $0x18] sm:$0x1]
        %s1806 = scalar_lea.vmem [#allocation9], 256
        %v1807 = vld [vmem:[%s1806] sm:$0xf]
        %v1808 = vld [vmem:[%s1806 + $0x4] sm:$0xf]
        %v1809 = vld [vmem:[%s1806 + $0x8] sm:$0xf]
        %v1810 = vld [vmem:[%s1806 + $0xc] sm:$0xf]
        %v1811 = vld [vmem:[%s1806 + $0x10] sm:$0xf]
        %v1812 = vld [vmem:[%s1806 + $0x14] sm:$0xf]
        %v1813 = vld [vmem:[%s1806 + $0x18] sm:$0xf]
        %v1814 = vld [vmem:[%s1806 + $0x1c] sm:$0xf]
        %v1815 = vld [vmem:[%s1806 + $0x20] sm:$0xf]
        %v1816 = vld [vmem:[%s1806 + $0x24] sm:$0xf]
        %v1817 = vld [vmem:[%s1806 + $0x28] sm:$0xf]
        %v1818 = vld [vmem:[%s1806 + $0x2c] sm:$0xf]
        %v1819 = vld [vmem:[%s1806 + $0x30] sm:$0xf]
        %v1820 = vld [vmem:[%s1806 + $0x34] sm:$0xf]
        %v1821 = vld [vmem:[%s1806 + $0x38] sm:$0xf]
        %v1822 = vld [vmem:[%s1806 + $0x3c] sm:$0xf]
        %v1824 = vshrl.u32 %v1803, 16
        %v1826 = vshll.u32 %v1803, 16
        %v1828 = vrot.slane %v1826, 1
        %v1829 = vor.u32 %v1824, %v1828
        %v1831 = vshll.u32 %v1804, 16
        %v1833 = vrot.slane %v1831, 1
        %v1834 = vsel %vm875, %v1829, %v1833
        %v1835 = vshrl.u32 %v1804, 16
        %v1837 = vor.u32 %v1835, %v1833
        %v1839 = vshll.u32 %v1805, 16
        %v1841 = vrot.slane %v1839, 1
        %v1842 = vsel %vm875, %v1837, %v1841
        %v1861 = vunpack.c.l.b16 %v1807
        %v1862 = vunpack.c.l.b16 %v1808
        %v1863 = vunpack.c.l.b16 %v1809
        %v1864 = vunpack.c.l.b16 %v1810
        %v1865 = vunpack.c.l.b16 %v1811
        %v1866 = vunpack.c.l.b16 %v1812
        %v1867 = vunpack.c.l.b16 %v1813
        %v1868 = vunpack.c.l.b16 %v1814
        %v1869 = vunpack.c.l.b16 %v1815
        %v1870 = vunpack.c.l.b16 %v1816
        %v1871 = vunpack.c.l.b16 %v1817
        %v1872 = vunpack.c.l.b16 %v1818
        %v1873 = vunpack.c.l.b16 %v1819
        %v1874 = vunpack.c.l.b16 %v1820
        %v1875 = vunpack.c.l.b16 %v1821
        %v1876 = vunpack.c.l.b16 %v1822
        %v1877 = vpack.c.b16 %v1862, %v1861
        %v1878 = vpack.c.b16 %v1864, %v1863
        %v1879 = vpack.c.b16 %v1866, %v1865
        %v1880 = vpack.c.b16 %v1868, %v1867
        %v1881 = vpack.c.b16 %v1870, %v1869
        %v1882 = vpack.c.b16 %v1872, %v1871
        %v1883 = vpack.c.b16 %v1874, %v1873
        %v1884 = vpack.c.b16 %v1876, %v1875
        %1893 = vmatprep.subr.bf16.mxu0 0
        %1894 = vmatpush1.bf16.msra.mxu0 %v1877
        %1895 = vmatprep.subr.bf16.mxu0 0
        %1896 = vmatpush1.bf16.msra.mxu0 %v1878
        %1897 = vmatprep.subr.bf16.mxu0 0
        %1898 = vmatpush1.bf16.msra.mxu0 %v1879
        %1899 = vmatprep.subr.bf16.mxu0 0
        %1900 = vmatpush1.bf16.msra.mxu0 %v1880
        %1901 = vmatprep.subr.bf16.mxu0 0
        %1902 = vmatpush1.bf16.msra.mxu0 %v1881
        %1903 = vmatprep.subr.bf16.mxu0 0
        %1904 = vmatpush1.bf16.msra.mxu0 %v1882
        %1905 = vmatprep.subr.bf16.mxu0 0
        %1906 = vmatpush1.bf16.msra.mxu0 %v1883
        %1907 = vmatprep.subr.bf16.mxu0 0
        %1908 = vmatpush1.bf16.msra.mxu0 %v1884
        %1909 = vmatprep.subr.bf16.mxu0 0
        %1910 = vmatpush1.bf16.msra.mxu0 0
        %1911 = vmatprep.subr.bf16.mxu0 0
        %1912 = vmatpush1.bf16.msra.mxu0 0
        %1913 = vmatprep.subr.bf16.mxu0 0
        %1914 = vmatpush1.bf16.msra.mxu0 0
        %1915 = vmatprep.subr.bf16.mxu0 0
        %1916 = vmatpush1.bf16.msra.mxu0 0
        %1917 = vmatprep.subr.bf16.mxu0 0
        %1918 = vmatpush1.bf16.msra.mxu0 0
        %1919 = vmatprep.subr.bf16.mxu0 0
        %1920 = vmatpush1.bf16.msra.mxu0 0
        %1921 = vmatprep.subr.bf16.mxu0 0
        %1922 = vmatpush1.bf16.msra.mxu0 0
        %1923 = vmatprep.subr.bf16.mxu0 0
        %1924 = vmatpush1.bf16.msra.mxu0 0
        %1925 = vmatprep.mubr.bf16.mxu0 0
        %1926 = vmatmul.mubr.bf16.gmra.mrb[0].mxu0 %v1834
        %v1927 = vpop.f32.mrb[0].mxu0
        %v1928 = vadd.f32 0.0, %v1927
        %v1929 = vpop.f32.mrb[0].mxu0
        %v1930 = vpop.f32.mrb[0].mxu0
        %v1931 = vadd.f32 0.0, %v1930
        %v1932 = vpop.f32.mrb[0].mxu0
        %1933 = vmatprep.mubr.bf16.mxu0 0
        %1934 = vmatmul.mubr.bf16.gmra.mrb[0].mxu0 %v1842
        %v1935 = vpop.f32.mrb[0].mxu0
        %v1936 = vpop.f32.mrb[0].mxu0
        %v1937 = vpop.f32.mrb[0].mxu0
        %v1938 = vpop.f32.mrb[0].mxu0
        %1939 = vdwg.mxu0
        %v1940 = vadd.f32 %v1801, %v1928
        %v1941 = vadd.f32 %v1802, %v1931
        %v1942 = vld [vmem:[#allocation3 + $0x8] sm:$0xfe]
        %s1943 = scalar_lea.vmem [#allocation9], 320
        %v1944 = vld [vmem:[%s1943] sm:$0xf]
        %v1945 = vld [vmem:[%s1943 + $0x4] sm:$0xf]
        %v1946 = vld [vmem:[%s1943 + $0x8] sm:$0xf]
        %v1947 = vld [vmem:[%s1943 + $0xc] sm:$0xf]
        %v1948 = vld [vmem:[%s1943 + $0x10] sm:$0xf]
        %v1949 = vld [vmem:[%s1943 + $0x14] sm:$0xf]
        %v1950 = vld [vmem:[%s1943 + $0x18] sm:$0xf]
        %v1951 = vld [vmem:[%s1943 + $0x1c] sm:$0xf]
        %v1952 = vld [vmem:[%s1943 + $0x20] sm:$0xf]
        %v1953 = vld [vmem:[%s1943 + $0x24] sm:$0xf]
        %v1954 = vld [vmem:[%s1943 + $0x28] sm:$0xf]
        %v1955 = vld [vmem:[%s1943 + $0x2c] sm:$0xf]
        %v1956 = vld [vmem:[%s1943 + $0x30] sm:$0xf]
        %v1957 = vld [vmem:[%s1943 + $0x34] sm:$0xf]
        %v1958 = vld [vmem:[%s1943 + $0x38] sm:$0xf]
        %v1959 = vld [vmem:[%s1943 + $0x3c] sm:$0xf]
        %v1963 = vrot.slane %v1942, 1
        %v1964 = vrot.slane %v1804, 1
        %v1965 = vsel %vm1016, %v1963, %v1964
        %v1966 = vrot.slane %v1805, 1
        %v1967 = vsel %vm1016, %v1964, %v1966
        %v1986 = vunpack.c.l.b16 %v1944
        %v1987 = vunpack.c.l.b16 %v1945
        %v1988 = vunpack.c.l.b16 %v1946
        %v1989 = vunpack.c.l.b16 %v1947
        %v1990 = vunpack.c.l.b16 %v1948
        %v1991 = vunpack.c.l.b16 %v1949
        %v1992 = vunpack.c.l.b16 %v1950
        %v1993 = vunpack.c.l.b16 %v1951
        %v1994 = vunpack.c.l.b16 %v1952
        %v1995 = vunpack.c.l.b16 %v1953
        %v1996 = vunpack.c.l.b16 %v1954
        %v1997 = vunpack.c.l.b16 %v1955
        %v1998 = vunpack.c.l.b16 %v1956
        %v1999 = vunpack.c.l.b16 %v1957
        %v2000 = vunpack.c.l.b16 %v1958
        %v2001 = vunpack.c.l.b16 %v1959
        %v2002 = vpack.c.b16 %v1987, %v1986
        %v2003 = vpack.c.b16 %v1989, %v1988
        %v2004 = vpack.c.b16 %v1991, %v1990
        %v2005 = vpack.c.b16 %v1993, %v1992
        %v2006 = vpack.c.b16 %v1995, %v1994
        %v2007 = vpack.c.b16 %v1997, %v1996
        %v2008 = vpack.c.b16 %v1999, %v1998
        %v2009 = vpack.c.b16 %v2001, %v2000
        %2018 = vmatprep.subr.bf16.mxu0 0
        %2019 = vmatpush1.bf16.msra.mxu0 %v2002
        %2020 = vmatprep.subr.bf16.mxu0 0
        %2021 = vmatpush1.bf16.msra.mxu0 %v2003
        %2022 = vmatprep.subr.bf16.mxu0 0
        %2023 = vmatpush1.bf16.msra.mxu0 %v2004
        %2024 = vmatprep.subr.bf16.mxu0 0
        %2025 = vmatpush1.bf16.msra.mxu0 %v2005
        %2026 = vmatprep.subr.bf16.mxu0 0
        %2027 = vmatpush1.bf16.msra.mxu0 %v2006
        %2028 = vmatprep.subr.bf16.mxu0 0
        %2029 = vmatpush1.bf16.msra.mxu0 %v2007
        %2030 = vmatprep.subr.bf16.mxu0 0
        %2031 = vmatpush1.bf16.msra.mxu0 %v2008
        %2032 = vmatprep.subr.bf16.mxu0 0
        %2033 = vmatpush1.bf16.msra.mxu0 %v2009
        %2034 = vmatprep.subr.bf16.mxu0 0
        %2035 = vmatpush1.bf16.msra.mxu0 0
        %2036 = vmatprep.subr.bf16.mxu0 0
        %2037 = vmatpush1.bf16.msra.mxu0 0
        %2038 = vmatprep.subr.bf16.mxu0 0
        %2039 = vmatpush1.bf16.msra.mxu0 0
        %2040 = vmatprep.subr.bf16.mxu0 0
        %2041 = vmatpush1.bf16.msra.mxu0 0
        %2042 = vmatprep.subr.bf16.mxu0 0
        %2043 = vmatpush1.bf16.msra.mxu0 0
        %2044 = vmatprep.subr.bf16.mxu0 0
        %2045 = vmatpush1.bf16.msra.mxu0 0
        %2046 = vmatprep.subr.bf16.mxu0 0
        %2047 = vmatpush1.bf16.msra.mxu0 0
        %2048 = vmatprep.subr.bf16.mxu0 0
        %2049 = vmatpush1.bf16.msra.mxu0 0
        %2050 = vmatprep.mubr.bf16.mxu0 0
        %2051 = vmatmul.mubr.bf16.gmra.mrb[0].mxu0 %v1965
        %v2052 = vpop.f32.mrb[0].mxu0
        %v2053 = vadd.f32 0.0, %v2052
        %v2054 = vpop.f32.mrb[0].mxu0
        %v2055 = vpop.f32.mrb[0].mxu0
        %v2056 = vadd.f32 0.0, %v2055
        %v2057 = vpop.f32.mrb[0].mxu0
        %2058 = vmatprep.mubr.bf16.mxu0 0
        %2059 = vmatmul.mubr.bf16.gmra.mrb[0].mxu0 %v1967
        %v2060 = vpop.f32.mrb[0].mxu0
        %v2061 = vpop.f32.mrb[0].mxu0
        %v2062 = vpop.f32.mrb[0].mxu0
        %v2063 = vpop.f32.mrb[0].mxu0
        %2064 = vdwg.mxu0
        %v2065 = vadd.f32 %v1940, %v2053
        %v2066 = vadd.f32 %v1941, %v2056
        %v2067 = vld [vmem:[#allocation3 + $0x18] sm:$0x3]
        %s2068 = scalar_lea.vmem [#allocation9], 384
        %v2069 = vld [vmem:[%s2068] sm:$0xf]
        %v2070 = vld [vmem:[%s2068 + $0x4] sm:$0xf]
        %v2071 = vld [vmem:[%s2068 + $0x8] sm:$0xf]
        %v2072 = vld [vmem:[%s2068 + $0xc] sm:$0xf]
        %v2073 = vld [vmem:[%s2068 + $0x10] sm:$0xf]
        %v2074 = vld [vmem:[%s2068 + $0x14] sm:$0xf]
        %v2075 = vld [vmem:[%s2068 + $0x18] sm:$0xf]
        %v2076 = vld [vmem:[%s2068 + $0x1c] sm:$0xf]
        %v2077 = vld [vmem:[%s2068 + $0x20] sm:$0xf]
        %v2078 = vld [vmem:[%s2068 + $0x24] sm:$0xf]
        %v2079 = vld [vmem:[%s2068 + $0x28] sm:$0xf]
        %v2080 = vld [vmem:[%s2068 + $0x2c] sm:$0xf]
        %v2081 = vld [vmem:[%s2068 + $0x30] sm:$0xf]
        %v2082 = vld [vmem:[%s2068 + $0x34] sm:$0xf]
        %v2083 = vld [vmem:[%s2068 + $0x38] sm:$0xf]
        %v2084 = vld [vmem:[%s2068 + $0x3c] sm:$0xf]
        %v2086 = vshrl.u32 %v1942, 16
        %v2088 = vrot.slane %v2086, 1
        %v2089 = vshll.u32 %v1942, 16
        %v2091 = vrot.slane %v2089, 2
        %v2092 = vor.u32 %v2088, %v2091
        %v2093 = vrot.slane %v1835, 1
        %v2094 = vrot.slane %v1831, 2
        %v2095 = vor.u32 %v2093, %v2094
        %v2096 = vsel %vm1139, %v2092, %v2095
        %v2098 = vshrl.u32 %v2067, 16
        %v2100 = vrot.slane %v2098, 1
        %v2101 = vshll.u32 %v2067, 16
        %v2103 = vrot.slane %v2101, 2
        %v2104 = vor.u32 %v2100, %v2103
        %v2105 = vsel %vm1139, %v2095, %v2104
        %v2124 = vunpack.c.l.b16 %v2069
        %v2125 = vunpack.c.l.b16 %v2070
        %v2126 = vunpack.c.l.b16 %v2071
        %v2127 = vunpack.c.l.b16 %v2072
        %v2128 = vunpack.c.l.b16 %v2073
        %v2129 = vunpack.c.l.b16 %v2074
        %v2130 = vunpack.c.l.b16 %v2075
        %v2131 = vunpack.c.l.b16 %v2076
        %v2132 = vunpack.c.l.b16 %v2077
        %v2133 = vunpack.c.l.b16 %v2078
        %v2134 = vunpack.c.l.b16 %v2079
        %v2135 = vunpack.c.l.b16 %v2080
        %v2136 = vunpack.c.l.b16 %v2081
        %v2137 = vunpack.c.l.b16 %v2082
        %v2138 = vunpack.c.l.b16 %v2083
        %v2139 = vunpack.c.l.b16 %v2084
        %v2140 = vpack.c.b16 %v2125, %v2124
        %v2141 = vpack.c.b16 %v2127, %v2126
        %v2142 = vpack.c.b16 %v2129, %v2128
        %v2143 = vpack.c.b16 %v2131, %v2130
        %v2144 = vpack.c.b16 %v2133, %v2132
        %v2145 = vpack.c.b16 %v2135, %v2134
        %v2146 = vpack.c.b16 %v2137, %v2136
        %v2147 = vpack.c.b16 %v2139, %v2138
        %2156 = vmatprep.subr.bf16.mxu0 0
        %2157 = vmatpush1.bf16.msra.mxu0 %v2140
        %2158 = vmatprep.subr.bf16.mxu0 0
        %2159 = vmatpush1.bf16.msra.mxu0 %v2141
        %2160 = vmatprep.subr.bf16.mxu0 0
        %2161 = vmatpush1.bf16.msra.mxu0 %v2142
        %2162 = vmatprep.subr.bf16.mxu0 0
        %2163 = vmatpush1.bf16.msra.mxu0 %v2143
        %2164 = vmatprep.subr.bf16.mxu0 0
        %2165 = vmatpush1.bf16.msra.mxu0 %v2144
        %2166 = vmatprep.subr.bf16.mxu0 0
        %2167 = vmatpush1.bf16.msra.mxu0 %v2145
        %2168 = vmatprep.subr.bf16.mxu0 0
        %2169 = vmatpush1.bf16.msra.mxu0 %v2146
        %2170 = vmatprep.subr.bf16.mxu0 0
        %2171 = vmatpush1.bf16.msra.mxu0 %v2147
        %2172 = vmatprep.subr.bf16.mxu0 0
        %2173 = vmatpush1.bf16.msra.mxu0 0
        %2174 = vmatprep.subr.bf16.mxu0 0
        %2175 = vmatpush1.bf16.msra.mxu0 0
        %2176 = vmatprep.subr.bf16.mxu0 0
        %2177 = vmatpush1.bf16.msra.mxu0 0
        %2178 = vmatprep.subr.bf16.mxu0 0
        %2179 = vmatpush1.bf16.msra.mxu0 0
        %2180 = vmatprep.subr.bf16.mxu0 0
        %2181 = vmatpush1.bf16.msra.mxu0 0
        %2182 = vmatprep.subr.bf16.mxu0 0
        %2183 = vmatpush1.bf16.msra.mxu0 0
        %2184 = vmatprep.subr.bf16.mxu0 0
        %2185 = vmatpush1.bf16.msra.mxu0 0
        %2186 = vmatprep.subr.bf16.mxu0 0
        %2187 = vmatpush1.bf16.msra.mxu0 0
        %2188 = vmatprep.mubr.bf16.mxu0 0
        %2189 = vmatmul.mubr.bf16.gmra.mrb[0].mxu0 %v2096
        %v2190 = vpop.f32.mrb[0].mxu0
        %v2191 = vadd.f32 0.0, %v2190
        %v2192 = vpop.f32.mrb[0].mxu0
        %v2193 = vpop.f32.mrb[0].mxu0
        %v2194 = vadd.f32 0.0, %v2193
        %v2195 = vpop.f32.mrb[0].mxu0
        %2196 = vmatprep.mubr.bf16.mxu0 0
        %2197 = vmatmul.mubr.bf16.gmra.mrb[0].mxu0 %v2105
        %v2198 = vpop.f32.mrb[0].mxu0
        %v2199 = vpop.f32.mrb[0].mxu0
        %v2200 = vpop.f32.mrb[0].mxu0
        %v2201 = vpop.f32.mrb[0].mxu0
        %2202 = vdwg.mxu0
        %v2203 = vadd.f32 %v2065, %v2191
        %v2204 = vadd.f32 %v2066, %v2194
        %v2206 = vlaneseq
        %v2207 = vshrl.u32 %v2206, 7
        %v2208 = vsub.s32 0, %v2207
        %v2209 = vrot.slane %v339, %v2208
        %v2211 = vmul.f32 %v2203, %v2209
        %v2212 = vmul.f32 %v2204, %v2209
        %v2214 = vlaneseq
        %v2215 = vshrl.u32 %v2214, 7
        %v2216 = vsub.s32 0, %v2215
        %v2217 = vrot.slane %v340, %v2216
        %v2219 = vadd.f32 %v2211, %v2217
        %v2220 = vadd.f32 %v2212, %v2217
        %v2221 = vld [vmem:[%s287] sm:$0xff]
        %v2222 = vld [vmem:[%s287 + $0x8] sm:$0xff]
        %v2223 = vadd.f32 %v2219, %v2221
        %v2224 = vadd.f32 %v2220, %v2222
        %v2225 = vxor.u32 %v2223, 2147483648
        %v2226 = vxor.u32 %v2224, 2147483648
        %v2227 = vmul.f32 %v2225, 1.442695
        %v2228 = vpow.pop %v2227
        %v2229 = vmul.f32 %v2226, 1.442695
        %v2230 = vpow.pop %v2229
        %v2231 = vadd.f32 %v2228, 1.0
        %v2232 = vadd.f32 %v2230, 1.0
        %v2233 = vrcp.pop %v2231
        %v2234 = vmul.f32 1.0, %v2233
        %v2235 = vrcp.pop %v2232
        %v2236 = vmul.f32 1.0, %v2235
        %v2237 = vmul.f32 %v2223, %v2234
        %v2238 = vmul.f32 %v2224, %v2236
        %2239 = vst [vmem:[%s325] sm:$0xff] %v2237
        %2240 = vst [vmem:[%s325 + $0x8] sm:$0xff] %v2238
        %s2241 = sand.u32 %s185, 1
        %s2242 = scalar_lea.sflag [#allocation6], %s2241
        %s2243 = sand.u32 %s185, 1
        %s2244 = smul.addr %s2243, 16
        %s2245 = scalar_lea.vmem [#allocation10], %s2244
        // Predicated region
        $region61: #{tpu_custom_call.1} parent=47 // pred_check
          %p2246 = pneg %p195
        $region62: #{tpu_custom_call.1} parent=47 // pred_check_branch
          %2248 = sbr.rel (%p2246) target = $region64
        $region63: #{tpu_custom_call.1} parent=47 // pred_region
          %s2250 = ssub.s32 256, 256
          %2251 = vsyncadd %s2242, %s2250
          %s2252 = smul.addr %s25, 2
          %s2253 = smul.addr %s2252, 128
          %s2254 = scalar_lea.hbm %s7, %s2253
          %s2255 = sshll.u32 %s2245, 4
          %s2256 = int_to_ptr.vmem [resolvable:$true] %s2255
          %2261 = dma.vmem_to_hbm [thread:$0]  %s2256, 256, %s2254, %s2242, 128, 128, 8
        $region64: #{tpu_custom_call.1} parent=47 // pred_fallthru
          _
      $region48: #{tpu_custom_call.1} parent=5 // pred_fallthru
        _
      %p2262 = scmp.le.s32.totalorder 2, %s20
      // Predicated region
      $region65: #{tpu_custom_call.1} parent=5 // pred_check
        %p2263 = pneg %p2262
      $region66: #{tpu_custom_call.1} parent=5 // pred_check_branch
        %2265 = sbr.rel (%p2263) target = $region68
      $region67: #{tpu_custom_call.1} parent=5 // pred_region
        %s2266 = ssub.s32 %s20, 2
        // Predicated region
        $region69: #{tpu_custom_call.1} parent=67 // pred_check
          %p2267 = pneg %p201
        $region70: #{tpu_custom_call.1} parent=67 // pred_check_branch
          %2269 = sbr.rel (%p2267) target = $region72
        $region71: #{tpu_custom_call.1} parent=67 // pred_region
          %s2270 = sand.u32 %s186, 1
          %s2271 = scalar_lea.sflag [#allocation6], %s2270
          %s2272 = sand.u32 %s186, 1
          %s2273 = smul.addr %s2272, 16
          %s2274 = scalar_lea.vmem [#allocation10], %s2273
          %2275 = dma.done %s2271, 256
        $region72: #{tpu_custom_call.1} parent=67 // pred_fallthru
          _
      $region68: #{tpu_custom_call.1} parent=5 // pred_fallthru
        _
    $region6: #{tpu_custom_call.1} parent=1 // loop_footer
      %s24 = sadd.s32 1, %s20
    $region7: #{tpu_custom_call.1} parent=1 // loop_footer_branch
      %19 = sbr.rel target = $region3
    $region8: #{tpu_custom_call.1} parent=1 // loop_exit
      _
    %2276 = vsyncpa [#allocation5], 1
    %s2277 = scalar_lea.sflag [#allocation5], 1
    %2278 = vsyncpa %s2277, 1
    %2279 = vsyncpa [#allocation8], 1
    %2280 = vsyncpa [#allocation6], 1
    %s2281 = scalar_lea.sflag [#allocation6], 1
    %2282 = vsyncpa %s2281, 1

</llo_original>
